<compile_context>
chip_gen: v6e
topology: v6e:2x2x1
jax: 0.10.0
libtpu: 0.0.40
codegen_flags: <defaults>
</compile_context>

<pallas_src>
import jax
import jax.numpy as jnp
from jax import lax
from jax.experimental import pallas as pl
from jax.experimental.pallas import tpu as pltpu


FC_PAD = 128                      # fc output padded 10 -> 128 lanes


def _round_up(x, m):
    return (x + m - 1) // m * m


def _default_vmem_limit():
    """Generation-aware scoped-VMEM budget (48 MiB on v7x, 96 MiB on v5e/v6e)."""
    try:
        cap = int(getattr(pltpu.get_tpu_info(), "vmem_capacity_bytes", 0) or 0)
        if cap > 0:
            return int(min(cap - cap // 4, 96 * 1024 * 1024))
    except Exception:
        pass
    return 32 * 1024 * 1024       # known-safe fallback on all generations


_VMEM_LIMIT = _default_vmem_limit()


def _pick_tm(M, row_bytes, *, target_bytes=4 << 20, min_steps=4, max_tm=2048):
    """Row-tile size: ~target_bytes per-step working set, >= min_steps grid
    steps for moderate/large M (pipelining + both v7x cores), minimal padding
    for tiny M."""
    if M <= 128:
        return _round_up(M, 8)
    tm_fit = max(128, (target_bytes // max(row_bytes, 1)) // 128 * 128)
    tm_split = max(128, _round_up(-(-M // min_steps), 128))
    return int(max(128, min(max_tm, tm_fit, tm_split, _round_up(M, 128))))


# ---------------------------------------------------------------------------
# Pallas kernels
# ---------------------------------------------------------------------------
def _net2_conv_stack_kernel(p_ref, w1_ref, b1_ref, w2_ref, b2_ref, o_ref):
    """Fused conv1+bias+ReLU+pool1 + conv2+bias+ReLU+pool2 for one row tile.

    p_ref : (TM, 128)   bf16  10x10/stride-4 input windows (zero padded 100->128)
    w1_ref: (128, 2048) bf16  conv1 weights: 4 pool1 phases x 16 sub-pos x 32 ch
    b1_ref: (1, 512)    f32   conv1 bias tiled over the 16 sub-positions
    w2_ref: (512, 256)  bf16  conv2 weights: 4 pool2 phases x 64 ch
    b2_ref: (1, 64)     f32   conv2 bias
    o_ref : (TM, 64)    bf16  pooled conv2 activations (fc input rows)
    """
    g1 = b1_ref.shape[1]          # 512 = 16 sub-positions x 32 channels
    g2 = b2_ref.shape[1]          # 64 channels

    # Stage 1: conv1 (pool phases packed along N) -> pool1 max -> bias -> ReLU.
    r1 = jnp.dot(p_ref[...], w1_ref[...], preferred_element_type=jnp.float32)
    m1 = r1[:, :g1]
    for ph in range(1, 4):
        m1 = jnp.maximum(m1, r1[:, ph * g1:(ph + 1) * g1])
    z1 = jnp.maximum(m1 + b1_ref[...], 0.0).astype(jnp.bfloat16)  # conv2 patches

    # Stage 2: conv2 (pool phases packed along N) -> pool2 max -> bias -> ReLU.
    r2 = jnp.dot(z1, w2_ref[...], preferred_element_type=jnp.float32)
    m2 = r2[:, :g2]
    for ph in range(1, 4):
        m2 = jnp.maximum(m2, r2[:, ph * g2:(ph + 1) * g2])
    o_ref[...] = jnp.maximum(m2 + b2_ref[...], 0.0).astype(o_ref.dtype)


def _matmul_bias_kernel(x_ref, w_ref, b_ref, o_ref):
    """o = x @ w + b with f32 accumulation (final fc layer, lane-dense N)."""
    acc = jnp.dot(x_ref[...], w_ref[...], preferred_element_type=jnp.float32)
    o_ref[...] = (acc + b_ref[...]).astype(o_ref.dtype)


# ---------------------------------------------------------------------------
# Pallas wrappers (M-tiled, parallel grid, weights/bias VMEM-resident)
# ---------------------------------------------------------------------------
def conv_stack(patches, w1big, b1t, w2big, b2r):
    """patches:(M,128) bf16 -> pooled conv2 activations (M,64) bf16."""
    M, K1 = patches.shape
    N1 = w1big.shape[1]
    G1 = b1t.shape[1]
    K2, N2 = w2big.shape
    C2 = b2r.shape[1]
    assert N1 == 4 * G1 and K2 == G1 and N2 == 4 * C2

    # per-row working-set bytes (input + f32 intermediates + output)
    row_bytes = K1 * 2 + N1 * 4 + G1 * 6 + N2 * 4 + C2 * 6
    tm = _pick_tm(M, row_bytes)
    Mp = _round_up(M, tm)
    if Mp != M:
        patches = jnp.pad(patches, ((0, Mp - M), (0, 0)))

    cost = pl.CostEstimate(
        flops=2 * Mp * (K1 * N1 + K2 * N2),
        transcendentals=0,
        bytes_accessed=int(Mp * K1 * 2 + K1 * N1 * 2 + K2 * N2 * 2
                           + Mp * C2 * 2 + G1 * 4 + C2 * 4))
    out = pl.pallas_call(
        _net2_conv_stack_kernel,
        out_shape=jax.ShapeDtypeStruct((Mp, C2), jnp.bfloat16),
        grid=(Mp // tm,),
        in_specs=[
            pl.BlockSpec((tm, K1), lambda i: (i, 0)),       # patch row tile
            pl.BlockSpec((K1, N1), lambda i: (0, 0)),       # resident conv1 weight
            pl.BlockSpec((1, G1), lambda i: (0, 0)),        # resident conv1 bias
            pl.BlockSpec((K2, N2), lambda i: (0, 0)),       # resident conv2 weight
            pl.BlockSpec((1, C2), lambda i: (0, 0)),        # resident conv2 bias
        ],
        out_specs=pl.BlockSpec((tm, C2), lambda i: (i, 0)),
        compiler_params=pltpu.CompilerParams(
            dimension_semantics=("parallel",),
            vmem_limit_bytes=_VMEM_LIMIT),
        cost_estimate=cost,
    )(patches, w1big, b1t, w2big, b2r)
    return out[:M]


def matmul_bias(x, w, b):
    """x:(M,K) bf16 @ w:(K,N) bf16 + b:(1,N) f32 -> (M,N) f32 (N lane-dense)."""
    M, K = x.shape
    N = w.shape[1]
    row_bytes = K * 2 + N * 8
    tm = _pick_tm(M, row_bytes)
    Mp = _round_up(M, tm)
    if Mp != M:
        x = jnp.pad(x, ((0, Mp - M), (0, 0)))
    cost = pl.CostEstimate(
        flops=2 * Mp * K * N, transcendentals=0,
        bytes_accessed=int(Mp * K * 2 + K * N * 2 + Mp * N * 4 + N * 4))
    out = pl.pallas_call(
        _matmul_bias_kernel,
        out_shape=jax.ShapeDtypeStruct((Mp, N), jnp.float32),
        grid=(Mp // tm,),
        in_specs=[
            pl.BlockSpec((tm, K), lambda i: (i, 0)),
            pl.BlockSpec((K, N), lambda i: (0, 0)),
            pl.BlockSpec((1, N), lambda i: (0, 0)),
        ],
        out_specs=pl.BlockSpec((tm, N), lambda i: (i, 0)),
        compiler_params=pltpu.CompilerParams(
            dimension_semantics=("parallel",),
            vmem_limit_bytes=_VMEM_LIMIT),
        cost_estimate=cost,
    )(x, w, b)
    return out[:M]


# ---------------------------------------------------------------------------
# Glue (layout only): one-time window extraction + one-time weight repacking
# ---------------------------------------------------------------------------
def extract_input_windows(x_bhw, *, win=10, stride=4, nout=5):
    """(B, 28, 28) single-channel -> (B*25, 100) 10x10/stride-4 input windows.

    Row (b, py, px) holds x[b, 4*py + ry, 4*px + rx]; feature index ry*10+rx.
    Done once on the tiny raw input; no intermediate activation is ever gathered.
    """
    B = x_bhw.shape[0]
    span = stride * (nout - 1) + 1
    rows = jnp.stack([x_bhw[:, r:r + span:stride, :] for r in range(win)],
                     axis=1)                               # (B, win, nout, W)
    pats = jnp.stack([rows[..., c:c + span:stride] for c in range(win)],
                     axis=2)                               # (B, win, win, nout, nout)
    pats = jnp.transpose(pats, (0, 3, 4, 1, 2))            # (B, nout, nout, win, win)
    return pats.reshape(B * nout * nout, win * win)


def _embed(w_hwio, oy, ox, size):
    """Place a (kh, kw, Cin, Cout) kernel at spatial offset (oy, ox) of a
    (size, size, Cin, Cout) zero canvas."""
    kh, kw = w_hwio.shape[0], w_hwio.shape[1]
    return jnp.pad(w_hwio, ((oy, size - kh - oy), (ox, size - kw - ox),
                            (0, 0), (0, 0)))


def prepare_params(params):
    """One-time repacking of PyTorch-layout parameters (hoisted out of forward)."""
    w1, b1, w2, b2, wfc, bfc = params
    c1 = w1.shape[0]                                       # 32
    c2 = w2.shape[0]                                       # 64

    # Stage-1 weight (100 -> pad 128, 2048): cols = (pool1 phase, 4x4 sub-pos, ch).
    w1_hwio = jnp.transpose(w1, (2, 3, 1, 0))              # (3, 3, 1, 32)
    phase_blocks = []
    for dy in (0, 1):
        for dx in (0, 1):
            pos_blocks = []
            for gy in range(4):
                for gx in range(4):
                    e = _embed(w1_hwio, 2 * gy + dy, 2 * gx + dx, 10)
                    pos_blocks.append(e.reshape(100, c1))
            phase_blocks.append(jnp.concatenate(pos_blocks, axis=1))   # (100, 512)
    w1big = jnp.concatenate(phase_blocks, axis=1)                      # (100, 2048)
    w1big = jnp.pad(w1big, ((0, 28), (0, 0))).astype(jnp.bfloat16)     # K: 100 -> 128
    b1t = jnp.tile(b1, 16).reshape(1, 16 * c1).astype(jnp.float32)     # (1, 512)

    # Stage-2 weight (512, 256): rows = (4x4 sub-pos, ch), cols = (pool2 phase, ch).
    w2_hwio = jnp.transpose(w2, (2, 3, 1, 0))              # (3, 3, 32, 64)
    phase_blocks = []
    for ey in (0, 1):
        for ex in (0, 1):
            e = _embed(w2_hwio, ey, ex, 4)                 # (4, 4, 32, 64)
            phase_blocks.append(e.reshape(16 * c1, c2))    # (512, 64)
    w2big = jnp.concatenate(phase_blocks, axis=1).astype(jnp.bfloat16) # (512, 256)
    b2r = b2.reshape(1, c2).astype(jnp.float32)

    # fc: permute to the kernel's (py, px, q) flattening and pad N 10 -> 128.
    n_cls = wfc.shape[0]
    wfc_mat = jnp.transpose(wfc.reshape(n_cls, c2, 5, 5),
                            (2, 3, 1, 0)).reshape(5 * 5 * c2, n_cls)
    wfc_pad = jnp.pad(wfc_mat, ((0, 0), (0, FC_PAD - n_cls))).astype(jnp.bfloat16)
    bfc_pad = jnp.pad(bfc, (0, FC_PAD - n_cls)).reshape(1, FC_PAD).astype(jnp.float32)

    return dict(w1=w1big, b1=b1t, w2=w2big, b2=b2r, wfc=wfc_pad, bfc=bfc_pad)


def net2_forward(x_nchw, prepped):
    """Pallas implementation of Net2.forward.  x_nchw: (B, 1, 28, 28) f32."""
    B = x_nchw.shape[0]
    x = x_nchw[:, 0, :, :].astype(jnp.bfloat16)            # (B, 28, 28), Cin = 1

    # 10x10 / stride-4 input windows: one row per pool2 output position.
    p = extract_input_windows(x)                           # (B*25, 100)
    p = jnp.pad(p, ((0, 0), (0, 28)))                      # lane-dense K: 100 -> 128

    # Fused conv1+ReLU+pool1+conv2+ReLU+pool2 (single Pallas kernel).
    y2 = conv_stack(p, prepped["w1"], prepped["b1"],
                    prepped["w2"], prepped["b2"])          # (B*25, 64) bf16

    # fc1 on the (py, px, q)-flattened features, padded to 128 output lanes.
    # TODO(synk): fold this matmul into the conv-stack epilogue (needs an
    # in-kernel (25, 64) -> (1, 1600) relayout per image).
    z = y2.reshape(B, 5 * 5 * 64)                          # (B, 1600)
    out = matmul_bias(z, prepped["wfc"], prepped["bfc"])   # (B, 128) f32
    return out[:, :10]


# ---------------------------------------------------------------------------
# Pure-JAX f32 reference (PyTorch semantics, NCHW) for a sanity check
# ---------------------------------------------------------------------------
def net2_reference(x_nchw, params):
    w1, b1, w2, b2, wfc, bfc = params
    dn = ('NCHW', 'OIHW', 'NCHW')
    y = lax.conv_general_dilated(x_nchw, w1, (1, 1), 'VALID', dimension_numbers=dn)
    y = jax.nn.relu(y + b1[None, :, None, None])
    y = lax.reduce_window(y, -jnp.inf, lax.max, (1, 1, 2, 2), (1, 1, 2, 2), 'VALID')
    y = lax.conv_general_dilated(y, w2, (1, 1), 'VALID', dimension_numbers=dn)
    y = jax.nn.relu(y + b2[None, :, None, None])
    y = lax.reduce_window(y, -jnp.inf, lax.max, (1, 1, 2, 2), (1, 1, 2, 2), 'VALID')
    z = y.reshape(y.shape[0], -1)                          # (c, h, w) flatten
    return z @ wfc.T + bfc


# ---------------------------------------------------------------------------
if __name__ == "__main__":
    key = jax.random.PRNGKey(0)
    k_x, k_w1, k_b1, k_w2, k_b2, k_wf, k_bf = jax.random.split(key, 7)

    # Deterministic synthetic parameters (PyTorch layouts: OIHW conv, (out,in) fc)
    w1 = 0.1 * jax.random.normal(k_w1, (32, 1, 3, 3), dtype=jnp.float32)
    b1 = 0.1 * jax.random.normal(k_b1, (32,), dtype=jnp.float32)
    w2 = 0.05 * jax.random.normal(k_w2, (64, 32, 3, 3), dtype=jnp.float32)
    b2 = 0.1 * jax.random.normal(k_b2, (64,), dtype=jnp.float32)
    wfc = 0.02 * jax.random.normal(k_wf, (10, 64 * 5 * 5), dtype=jnp.float32)
    bfc = 0.1 * jax.random.normal(k_bf, (10,), dtype=jnp.float32)
    params = (w1, b1, w2, b2, wfc, bfc)

    # Hoisted weight repacking: done once, reused by every forward call.
    prepped = prepare_params(params)

    # MNIST-shaped input implied by fc1 (64*5*5): (B, 1, 28, 28)
    x = jax.random.normal(k_x, (2, 1, 28, 28), dtype=jnp.float32)

    fwd = jax.jit(net2_forward)
    out = jax.block_until_ready(fwd(x, prepped))
    assert out.shape == (2, 10)

    # Tolerance reflects bf16 matmul operands (f32 accumulation) vs f32 reference.
    ref = jax.block_until_ready(net2_reference(x, params))
    assert jnp.allclose(out, ref, atol=2e-2, rtol=2e-2), "mismatch vs reference"

    print("KERNEL_OK")
</pallas_src>

<mosaic_0001>
module attributes {stable_mosaic.version = 11 : i64} {
  func.func @_net2_conv_stack_kernel(%arg0: i32, %arg1: memref<56x128xbf16, #tpu.memory_space<vmem>>, %arg2: memref<128x2048xbf16, #tpu.memory_space<vmem>>, %arg3: memref<1x512xf32, #tpu.memory_space<vmem>>, %arg4: memref<512x256xbf16, #tpu.memory_space<vmem>>, %arg5: memref<1x64xf32, #tpu.memory_space<vmem>>, %arg6: memref<56x64xbf16, #tpu.memory_space<vmem>>) attributes {dimension_semantics = [#tpu.dimension_semantics<parallel>], iteration_bounds = array<i64: 1>, scalar_prefetch = 0 : i64, scratch_operands = 0 : i64, tpu.core_type = #tpu.core_type<tc>, window_params = [{transform_indices = @transform_0, window_bounds = array<i64: 56, 128>}, {pipeline_mode = #tpu.pipeline_mode<synchronous>, transform_indices = @transform_1, window_bounds = array<i64: 128, 2048>}, {pipeline_mode = #tpu.pipeline_mode<synchronous>, transform_indices = @transform_2, window_bounds = array<i64: 1, 512>}, {pipeline_mode = #tpu.pipeline_mode<synchronous>, transform_indices = @transform_3, window_bounds = array<i64: 512, 256>}, {pipeline_mode = #tpu.pipeline_mode<synchronous>, transform_indices = @transform_4, window_bounds = array<i64: 1, 64>}, {transform_indices = @transform_5, window_bounds = array<i64: 56, 64>}]} {
    %c0 = arith.constant 0 : index
    %c0_0 = arith.constant 0 : index
    %0 = vector.load %arg1[%c0, %c0_0] : memref<56x128xbf16, #tpu.memory_space<vmem>>, vector<56x128xbf16>
    %c0_1 = arith.constant 0 : index
    %c0_2 = arith.constant 0 : index
    %1 = vector.load %arg2[%c0_1, %c0_2] : memref<128x2048xbf16, #tpu.memory_space<vmem>>, vector<128x2048xbf16>
    %cst = arith.constant dense<0.000000e+00> : vector<56x2048xf32>
    %2 = tpu.matmul %0, %1, %cst {dimension_numbers = #tpu.dot_dimension_numbers<[1], [0], [0], [1], [0, 0, 1, 1], [], []>} : vector<56x128xbf16>, vector<128x2048xbf16>, vector<56x2048xf32> -> vector<56x2048xf32>
    %3 = vector.extract_strided_slice %2 {offsets = [0, 0], sizes = [56, 512], strides = [1, 1]} : vector<56x2048xf32> to vector<56x512xf32>
    %4 = vector.extract_strided_slice %2 {offsets = [0, 512], sizes = [56, 512], strides = [1, 1]} : vector<56x2048xf32> to vector<56x512xf32>
    %5 = arith.maximumf %3, %4 : vector<56x512xf32>
    %6 = vector.extract_strided_slice %2 {offsets = [0, 1024], sizes = [56, 512], strides = [1, 1]} : vector<56x2048xf32> to vector<56x512xf32>
    %7 = arith.maximumf %5, %6 : vector<56x512xf32>
    %8 = vector.extract_strided_slice %2 {offsets = [0, 1536], sizes = [56, 512], strides = [1, 1]} : vector<56x2048xf32> to vector<56x512xf32>
    %9 = arith.maximumf %7, %8 : vector<56x512xf32>
    %c0_3 = arith.constant 0 : index
    %c0_4 = arith.constant 0 : index
    %10 = vector.load %arg3[%c0_3, %c0_4] : memref<1x512xf32, #tpu.memory_space<vmem>>, vector<1x512xf32>
    %11 = vector.broadcast %10 : vector<1x512xf32> to vector<56x512xf32>
    %12 = arith.addf %9, %11 : vector<56x512xf32>
    %cst_5 = arith.constant 0.000000e+00 : f32
    %13 = vector.broadcast %cst_5 : f32 to vector<56x512xf32>
    %14 = arith.maximumf %12, %13 : vector<56x512xf32>
    %15 = arith.truncf %14 : vector<56x512xf32> to vector<56x512xbf16>
    %c0_6 = arith.constant 0 : index
    %c0_7 = arith.constant 0 : index
    %16 = vector.load %arg4[%c0_6, %c0_7] : memref<512x256xbf16, #tpu.memory_space<vmem>>, vector<512x256xbf16>
    %cst_8 = arith.constant dense<0.000000e+00> : vector<56x256xf32>
    %17 = tpu.matmul %15, %16, %cst_8 {dimension_numbers = #tpu.dot_dimension_numbers<[1], [0], [0], [1], [0, 0, 1, 1], [], []>} : vector<56x512xbf16>, vector<512x256xbf16>, vector<56x256xf32> -> vector<56x256xf32>
    %18 = vector.extract_strided_slice %17 {offsets = [0, 0], sizes = [56, 64], strides = [1, 1]} : vector<56x256xf32> to vector<56x64xf32>
    %19 = vector.extract_strided_slice %17 {offsets = [0, 64], sizes = [56, 64], strides = [1, 1]} : vector<56x256xf32> to vector<56x64xf32>
    %20 = arith.maximumf %18, %19 : vector<56x64xf32>
    %21 = vector.extract_strided_slice %17 {offsets = [0, 128], sizes = [56, 64], strides = [1, 1]} : vector<56x256xf32> to vector<56x64xf32>
    %22 = arith.maximumf %20, %21 : vector<56x64xf32>
    %23 = vector.extract_strided_slice %17 {offsets = [0, 192], sizes = [56, 64], strides = [1, 1]} : vector<56x256xf32> to vector<56x64xf32>
    %24 = arith.maximumf %22, %23 : vector<56x64xf32>
    %c0_9 = arith.constant 0 : index
    %c0_10 = arith.constant 0 : index
    %25 = vector.load %arg5[%c0_9, %c0_10] : memref<1x64xf32, #tpu.memory_space<vmem>>, vector<1x64xf32>
    %26 = vector.broadcast %25 : vector<1x64xf32> to vector<56x64xf32>
    %27 = arith.addf %24, %26 : vector<56x64xf32>
    %cst_11 = arith.constant 0.000000e+00 : f32
    %28 = vector.broadcast %cst_11 : f32 to vector<56x64xf32>
    %29 = arith.maximumf %27, %28 : vector<56x64xf32>
    %30 = arith.truncf %29 : vector<56x64xf32> to vector<56x64xbf16>
    %c0_12 = arith.constant 0 : index
    %c0_13 = arith.constant 0 : index
    %31 = vector.load %arg6[%c0_12, %c0_13] : memref<56x64xbf16, #tpu.memory_space<vmem>>, vector<56x64xbf16>
    tpu.vector_store %arg6[%c0_12, %c0_13], %30 {strides = array<i32>} : memref<56x64xbf16, #tpu.memory_space<vmem>>, vector<56x64xbf16>,
    return
  }
  func.func @transform_0(%arg0: i32) -> (i32, i32) {
    %c0_i32 = arith.constant 0 : i32
    %c0_i32_0 = arith.constant 0 : i32
    return %arg0, %c0_i32 : i32, i32
  }
  func.func @transform_1(%arg0: i32) -> (i32, i32) {
    %c0_i32 = arith.constant 0 : i32
    %c0_i32_0 = arith.constant 0 : i32
    %c0_i32_1 = arith.constant 0 : i32
    return %c0_i32, %c0_i32_0 : i32, i32
  }
  func.func @transform_2(%arg0: i32) -> (i32, i32) {
    %c0_i32 = arith.constant 0 : i32
    %c0_i32_0 = arith.constant 0 : i32
    %c0_i32_1 = arith.constant 0 : i32
    return %c0_i32, %c0_i32_0 : i32, i32
  }
  func.func @transform_3(%arg0: i32) -> (i32, i32) {
    %c0_i32 = arith.constant 0 : i32
    %c0_i32_0 = arith.constant 0 : i32
    %c0_i32_1 = arith.constant 0 : i32
    return %c0_i32, %c0_i32_0 : i32, i32
  }
  func.func @transform_4(%arg0: i32) -> (i32, i32) {
    %c0_i32 = arith.constant 0 : i32
    %c0_i32_0 = arith.constant 0 : i32
    %c0_i32_1 = arith.constant 0 : i32
    return %c0_i32, %c0_i32_0 : i32, i32
  }
  func.func @transform_5(%arg0: i32) -> (i32, i32) {
    %c0_i32 = arith.constant 0 : i32
    %c0_i32_0 = arith.constant 0 : i32
    return %arg0, %c0_i32 : i32, i32
  }
}

module attributes {stable_mosaic.version = 11 : i64} {
  func.func @_matmul_bias_kernel(%arg0: i32, %arg1: memref<8x1600xbf16, #tpu.memory_space<vmem>>, %arg2: memref<1600x128xbf16, #tpu.memory_space<vmem>>, %arg3: memref<1x128xf32, #tpu.memory_space<vmem>>, %arg4: memref<8x128xf32, #tpu.memory_space<vmem>>) attributes {dimension_semantics = [#tpu.dimension_semantics<parallel>], iteration_bounds = array<i64: 1>, scalar_prefetch = 0 : i64, scratch_operands = 0 : i64, tpu.core_type = #tpu.core_type<tc>, window_params = [{transform_indices = @transform_0, window_bounds = array<i64: 8, 1600>}, {pipeline_mode = #tpu.pipeline_mode<synchronous>, transform_indices = @transform_1, window_bounds = array<i64: 1600, 128>}, {pipeline_mode = #tpu.pipeline_mode<synchronous>, transform_indices = @transform_2, window_bounds = array<i64: 1, 128>}, {transform_indices = @transform_3, window_bounds = array<i64: 8, 128>}]} {
    %c0 = arith.constant 0 : index
    %c0_0 = arith.constant 0 : index
    %0 = vector.load %arg1[%c0, %c0_0] : memref<8x1600xbf16, #tpu.memory_space<vmem>>, vector<8x1600xbf16>
    %c0_1 = arith.constant 0 : index
    %c0_2 = arith.constant 0 : index
    %1 = vector.load %arg2[%c0_1, %c0_2] : memref<1600x128xbf16, #tpu.memory_space<vmem>>, vector<1600x128xbf16>
    %cst = arith.constant dense<0.000000e+00> : vector<8x128xf32>
    %2 = tpu.matmul %0, %1, %cst {dimension_numbers = #tpu.dot_dimension_numbers<[1], [0], [0], [1], [0, 0, 1, 1], [], []>} : vector<8x1600xbf16>, vector<1600x128xbf16>, vector<8x128xf32> -> vector<8x128xf32>
    %c0_3 = arith.constant 0 : index
    %c0_4 = arith.constant 0 : index
    %3 = vector.load %arg3[%c0_3, %c0_4] : memref<1x128xf32, #tpu.memory_space<vmem>>, vector<1x128xf32>
    %4 = vector.broadcast %3 : vector<1x128xf32> to vector<8x128xf32>
    %5 = arith.addf %2, %4 : vector<8x128xf32>
    %c0_5 = arith.constant 0 : index
    %c0_6 = arith.constant 0 : index
    %6 = vector.load %arg4[%c0_5, %c0_6] : memref<8x128xf32, #tpu.memory_space<vmem>>, vector<8x128xf32>
    tpu.vector_store %arg4[%c0_5, %c0_6], %5 {strides = array<i32>} : memref<8x128xf32, #tpu.memory_space<vmem>>, vector<8x128xf32>,
    return
  }
  func.func @transform_0(%arg0: i32) -> (i32, i32) {
    %c0_i32 = arith.constant 0 : i32
    %c0_i32_0 = arith.constant 0 : i32
    return %arg0, %c0_i32 : i32, i32
  }
  func.func @transform_1(%arg0: i32) -> (i32, i32) {
    %c0_i32 = arith.constant 0 : i32
    %c0_i32_0 = arith.constant 0 : i32
    %c0_i32_1 = arith.constant 0 : i32
    return %c0_i32, %c0_i32_0 : i32, i32
  }
  func.func @transform_2(%arg0: i32) -> (i32, i32) {
    %c0_i32 = arith.constant 0 : i32
    %c0_i32_0 = arith.constant 0 : i32
    %c0_i32_1 = arith.constant 0 : i32
    return %c0_i32, %c0_i32_0 : i32, i32
  }
  func.func @transform_3(%arg0: i32) -> (i32, i32) {
    %c0_i32 = arith.constant 0 : i32
    %c0_i32_0 = arith.constant 0 : i32
    return %arg0, %c0_i32 : i32, i32
  }
}

</mosaic_0001>

<llo_original>
// kernel: net2_forward.3
$region0: #{net2_forward.3}
  #allocation0 [shape = 'u32[]', space=smem, size = 0x4, offset = 0x4, fixed_abs, tag = 'smem constant byte address 0x4 - core index']
  #allocation1 [shape = 'u32[144,128]{1,0:T(1,128)}', space=vmem, size = 0x12000, scoped, tag = 'internal scratch']
  %s0 = inlined_call_operand.vmem [shape: bf16[8,1600], index: 0, kind: input, shape index: {}]
  %s1 = inlined_call_operand.vmem [shape: bf16[1600,128], index: 1, kind: input, shape index: {}]
  %s2 = inlined_call_operand.vmem [shape: f32[1,128], index: 2, kind: input, shape index: {}]
  %s3 = inlined_call_operand.vmem [shape: f32[8,128], index: 3, kind: output, shape index: {}]
  %s4 = sld [smem:[#allocation0]]
  $region22: #{net2_forward.3} parent=0
    _
  %s6 = ssub.s32 1, %s4
  %s7 = scalar_select 0, %s6, %s4
  // Predicated region
  $region2: #{net2_forward.3} parent=0 // pred_check
    _
  $region3: #{net2_forward.3} parent=0 // pred_check_branch
    %9 = sbr.rel (0) target = $region5
  $region4: #{net2_forward.3} parent=0 // pred_region
    _
  $region5: #{net2_forward.3} parent=0 // pred_fallthru
    _
  // Predicated region
  $region6: #{net2_forward.3} parent=0 // pred_check
    _
  $region7: #{net2_forward.3} parent=0 // pred_check_branch
    %11 = sbr.rel (0) target = $region9
  $region8: #{net2_forward.3} parent=0 // pred_region
    _
  $region9: #{net2_forward.3} parent=0 // pred_fallthru
    _
  // Predicated region
  $region10: #{net2_forward.3} parent=0 // pred_check
    _
  $region11: #{net2_forward.3} parent=0 // pred_check_branch
    %13 = sbr.rel (0) target = $region13
  $region12: #{net2_forward.3} parent=0 // pred_region
    _
  $region13: #{net2_forward.3} parent=0 // pred_fallthru
    _
  %v15 = vld [vmem:[%s0] sm:$0xff]
  %v16 = vld [vmem:[%s0 + $0x8] sm:$0xff]
  %v17 = vld [vmem:[%s0 + $0x10] sm:$0xff]
  %v18 = vld [vmem:[%s0 + $0x18] sm:$0xff]
  %v19 = vld [vmem:[%s0 + $0x20] sm:$0xff]
  %v20 = vld [vmem:[%s0 + $0x28] sm:$0xff]
  %v21 = vld [vmem:[%s0 + $0x30] sm:$0xf]
  %v22 = vld [vmem:[%s1] sm:$0xf]
  %v23 = vld [vmem:[%s1 + $0x4] sm:$0xf]
  %v24 = vld [vmem:[%s1 + $0x8] sm:$0xf]
  %v25 = vld [vmem:[%s1 + $0xc] sm:$0xf]
  %v26 = vld [vmem:[%s1 + $0x10] sm:$0xf]
  %v27 = vld [vmem:[%s1 + $0x14] sm:$0xf]
  %v28 = vld [vmem:[%s1 + $0x18] sm:$0xf]
  %v29 = vld [vmem:[%s1 + $0x1c] sm:$0xf]
  %v30 = vld [vmem:[%s1 + $0x20] sm:$0xf]
  %v31 = vld [vmem:[%s1 + $0x24] sm:$0xf]
  %v32 = vld [vmem:[%s1 + $0x28] sm:$0xf]
  %v33 = vld [vmem:[%s1 + $0x2c] sm:$0xf]
  %v34 = vld [vmem:[%s1 + $0x30] sm:$0xf]
  %v35 = vld [vmem:[%s1 + $0x34] sm:$0xf]
  %v36 = vld [vmem:[%s1 + $0x38] sm:$0xf]
  %v37 = vld [vmem:[%s1 + $0x3c] sm:$0xf]
  %v38 = vld [vmem:[%s1 + $0x40] sm:$0xf]
  %v39 = vld [vmem:[%s1 + $0x44] sm:$0xf]
  %v40 = vld [vmem:[%s1 + $0x48] sm:$0xf]
  %v41 = vld [vmem:[%s1 + $0x4c] sm:$0xf]
  %v42 = vld [vmem:[%s1 + $0x50] sm:$0xf]
  %v43 = vld [vmem:[%s1 + $0x54] sm:$0xf]
  %v44 = vld [vmem:[%s1 + $0x58] sm:$0xf]
  %v45 = vld [vmem:[%s1 + $0x5c] sm:$0xf]
  %v46 = vld [vmem:[%s1 + $0x60] sm:$0xf]
  %v47 = vld [vmem:[%s1 + $0x64] sm:$0xf]
  %v48 = vld [vmem:[%s1 + $0x68] sm:$0xf]
  %v49 = vld [vmem:[%s1 + $0x6c] sm:$0xf]
  %v50 = vld [vmem:[%s1 + $0x70] sm:$0xf]
  %v51 = vld [vmem:[%s1 + $0x74] sm:$0xf]
  %v52 = vld [vmem:[%s1 + $0x78] sm:$0xf]
  %v53 = vld [vmem:[%s1 + $0x7c] sm:$0xf]
  %v54 = vld [vmem:[%s1 + $0x80] sm:$0xf]
  %v55 = vld [vmem:[%s1 + $0x84] sm:$0xf]
  %v56 = vld [vmem:[%s1 + $0x88] sm:$0xf]
  %v57 = vld [vmem:[%s1 + $0x8c] sm:$0xf]
  %v58 = vld [vmem:[%s1 + $0x90] sm:$0xf]
  %v59 = vld [vmem:[%s1 + $0x94] sm:$0xf]
  %v60 = vld [vmem:[%s1 + $0x98] sm:$0xf]
  %v61 = vld [vmem:[%s1 + $0x9c] sm:$0xf]
  %v62 = vld [vmem:[%s1 + $0xa0] sm:$0xf]
  %v63 = vld [vmem:[%s1 + $0xa4] sm:$0xf]
  %v64 = vld [vmem:[%s1 + $0xa8] sm:$0xf]
  %v65 = vld [vmem:[%s1 + $0xac] sm:$0xf]
  %v66 = vld [vmem:[%s1 + $0xb0] sm:$0xf]
  %v67 = vld [vmem:[%s1 + $0xb4] sm:$0xf]
  %v68 = vld [vmem:[%s1 + $0xb8] sm:$0xf]
  %v69 = vld [vmem:[%s1 + $0xbc] sm:$0xf]
  %v70 = vld [vmem:[%s1 + $0xc0] sm:$0xf]
  %v71 = vld [vmem:[%s1 + $0xc4] sm:$0xf]
  %v72 = vld [vmem:[%s1 + $0xc8] sm:$0xf]
  %v73 = vld [vmem:[%s1 + $0xcc] sm:$0xf]
  %v74 = vld [vmem:[%s1 + $0xd0] sm:$0xf]
  %v75 = vld [vmem:[%s1 + $0xd4] sm:$0xf]
  %v76 = vld [vmem:[%s1 + $0xd8] sm:$0xf]
  %v77 = vld [vmem:[%s1 + $0xdc] sm:$0xf]
  %v78 = vld [vmem:[%s1 + $0xe0] sm:$0xf]
  %v79 = vld [vmem:[%s1 + $0xe4] sm:$0xf]
  %v80 = vld [vmem:[%s1 + $0xe8] sm:$0xf]
  %v81 = vld [vmem:[%s1 + $0xec] sm:$0xf]
  %v82 = vld [vmem:[%s1 + $0xf0] sm:$0xf]
  %v83 = vld [vmem:[%s1 + $0xf4] sm:$0xf]
  %v84 = vld [vmem:[%s1 + $0xf8] sm:$0xf]
  %v85 = vld [vmem:[%s1 + $0xfc] sm:$0xf]
  %v86 = vld [vmem:[%s1 + $0x100] sm:$0xf]
  %v87 = vld [vmem:[%s1 + $0x104] sm:$0xf]
  %v88 = vld [vmem:[%s1 + $0x108] sm:$0xf]
  %v89 = vld [vmem:[%s1 + $0x10c] sm:$0xf]
  %v90 = vld [vmem:[%s1 + $0x110] sm:$0xf]
  %v91 = vld [vmem:[%s1 + $0x114] sm:$0xf]
  %v92 = vld [vmem:[%s1 + $0x118] sm:$0xf]
  %v93 = vld [vmem:[%s1 + $0x11c] sm:$0xf]
  %v94 = vld [vmem:[%s1 + $0x120] sm:$0xf]
  %v95 = vld [vmem:[%s1 + $0x124] sm:$0xf]
  %v96 = vld [vmem:[%s1 + $0x128] sm:$0xf]
  %v97 = vld [vmem:[%s1 + $0x12c] sm:$0xf]
  %v98 = vld [vmem:[%s1 + $0x130] sm:$0xf]
  %v99 = vld [vmem:[%s1 + $0x134] sm:$0xf]
  %v100 = vld [vmem:[%s1 + $0x138] sm:$0xf]
  %v101 = vld [vmem:[%s1 + $0x13c] sm:$0xf]
  %v102 = vld [vmem:[%s1 + $0x140] sm:$0xf]
  %v103 = vld [vmem:[%s1 + $0x144] sm:$0xf]
  %v104 = vld [vmem:[%s1 + $0x148] sm:$0xf]
  %v105 = vld [vmem:[%s1 + $0x14c] sm:$0xf]
  %v106 = vld [vmem:[%s1 + $0x150] sm:$0xf]
  %v107 = vld [vmem:[%s1 + $0x154] sm:$0xf]
  %v108 = vld [vmem:[%s1 + $0x158] sm:$0xf]
  %v109 = vld [vmem:[%s1 + $0x15c] sm:$0xf]
  %v110 = vld [vmem:[%s1 + $0x160] sm:$0xf]
  %v111 = vld [vmem:[%s1 + $0x164] sm:$0xf]
  %v112 = vld [vmem:[%s1 + $0x168] sm:$0xf]
  %v113 = vld [vmem:[%s1 + $0x16c] sm:$0xf]
  %v114 = vld [vmem:[%s1 + $0x170] sm:$0xf]
  %v115 = vld [vmem:[%s1 + $0x174] sm:$0xf]
  %v116 = vld [vmem:[%s1 + $0x178] sm:$0xf]
  %v117 = vld [vmem:[%s1 + $0x17c] sm:$0xf]
  %v118 = vld [vmem:[%s1 + $0x180] sm:$0xf]
  %v119 = vld [vmem:[%s1 + $0x184] sm:$0xf]
  %v120 = vld [vmem:[%s1 + $0x188] sm:$0xf]
  %v121 = vld [vmem:[%s1 + $0x18c] sm:$0xf]
  %v122 = vld [vmem:[%s1 + $0x190] sm:$0xf]
  %v123 = vld [vmem:[%s1 + $0x194] sm:$0xf]
  %v124 = vld [vmem:[%s1 + $0x198] sm:$0xf]
  %v125 = vld [vmem:[%s1 + $0x19c] sm:$0xf]
  %v126 = vld [vmem:[%s1 + $0x1a0] sm:$0xf]
  %v127 = vld [vmem:[%s1 + $0x1a4] sm:$0xf]
  %v128 = vld [vmem:[%s1 + $0x1a8] sm:$0xf]
  %v129 = vld [vmem:[%s1 + $0x1ac] sm:$0xf]
  %v130 = vld [vmem:[%s1 + $0x1b0] sm:$0xf]
  %v131 = vld [vmem:[%s1 + $0x1b4] sm:$0xf]
  %v132 = vld [vmem:[%s1 + $0x1b8] sm:$0xf]
  %v133 = vld [vmem:[%s1 + $0x1bc] sm:$0xf]
  %v134 = vld [vmem:[%s1 + $0x1c0] sm:$0xf]
  %v135 = vld [vmem:[%s1 + $0x1c4] sm:$0xf]
  %v136 = vld [vmem:[%s1 + $0x1c8] sm:$0xf]
  %v137 = vld [vmem:[%s1 + $0x1cc] sm:$0xf]
  %v138 = vld [vmem:[%s1 + $0x1d0] sm:$0xf]
  %v139 = vld [vmem:[%s1 + $0x1d4] sm:$0xf]
  %v140 = vld [vmem:[%s1 + $0x1d8] sm:$0xf]
  %v141 = vld [vmem:[%s1 + $0x1dc] sm:$0xf]
  %v142 = vld [vmem:[%s1 + $0x1e0] sm:$0xf]
  %v143 = vld [vmem:[%s1 + $0x1e4] sm:$0xf]
  %v144 = vld [vmem:[%s1 + $0x1e8] sm:$0xf]
  %v145 = vld [vmem:[%s1 + $0x1ec] sm:$0xf]
  %v146 = vld [vmem:[%s1 + $0x1f0] sm:$0xf]
  %v147 = vld [vmem:[%s1 + $0x1f4] sm:$0xf]
  %v148 = vld [vmem:[%s1 + $0x1f8] sm:$0xf]
  %v149 = vld [vmem:[%s1 + $0x1fc] sm:$0xf]
  %v150 = vld [vmem:[%s1 + $0x200] sm:$0xf]
  %v151 = vld [vmem:[%s1 + $0x204] sm:$0xf]
  %v152 = vld [vmem:[%s1 + $0x208] sm:$0xf]
  %v153 = vld [vmem:[%s1 + $0x20c] sm:$0xf]
  %v154 = vld [vmem:[%s1 + $0x210] sm:$0xf]
  %v155 = vld [vmem:[%s1 + $0x214] sm:$0xf]
  %v156 = vld [vmem:[%s1 + $0x218] sm:$0xf]
  %v157 = vld [vmem:[%s1 + $0x21c] sm:$0xf]
  %v158 = vld [vmem:[%s1 + $0x220] sm:$0xf]
  %v159 = vld [vmem:[%s1 + $0x224] sm:$0xf]
  %v160 = vld [vmem:[%s1 + $0x228] sm:$0xf]
  %v161 = vld [vmem:[%s1 + $0x22c] sm:$0xf]
  %v162 = vld [vmem:[%s1 + $0x230] sm:$0xf]
  %v163 = vld [vmem:[%s1 + $0x234] sm:$0xf]
  %v164 = vld [vmem:[%s1 + $0x238] sm:$0xf]
  %v165 = vld [vmem:[%s1 + $0x23c] sm:$0xf]
  %v166 = vld [vmem:[%s1 + $0x240] sm:$0xf]
  %v167 = vld [vmem:[%s1 + $0x244] sm:$0xf]
  %v168 = vld [vmem:[%s1 + $0x248] sm:$0xf]
  %v169 = vld [vmem:[%s1 + $0x24c] sm:$0xf]
  %v170 = vld [vmem:[%s1 + $0x250] sm:$0xf]
  %v171 = vld [vmem:[%s1 + $0x254] sm:$0xf]
  %v172 = vld [vmem:[%s1 + $0x258] sm:$0xf]
  %v173 = vld [vmem:[%s1 + $0x25c] sm:$0xf]
  %v174 = vld [vmem:[%s1 + $0x260] sm:$0xf]
  %v175 = vld [vmem:[%s1 + $0x264] sm:$0xf]
  %v176 = vld [vmem:[%s1 + $0x268] sm:$0xf]
  %v177 = vld [vmem:[%s1 + $0x26c] sm:$0xf]
  %v178 = vld [vmem:[%s1 + $0x270] sm:$0xf]
  %v179 = vld [vmem:[%s1 + $0x274] sm:$0xf]
  %v180 = vld [vmem:[%s1 + $0x278] sm:$0xf]
  %v181 = vld [vmem:[%s1 + $0x27c] sm:$0xf]
  %v182 = vld [vmem:[%s1 + $0x280] sm:$0xf]
  %v183 = vld [vmem:[%s1 + $0x284] sm:$0xf]
  %v184 = vld [vmem:[%s1 + $0x288] sm:$0xf]
  %v185 = vld [vmem:[%s1 + $0x28c] sm:$0xf]
  %v186 = vld [vmem:[%s1 + $0x290] sm:$0xf]
  %v187 = vld [vmem:[%s1 + $0x294] sm:$0xf]
  %v188 = vld [vmem:[%s1 + $0x298] sm:$0xf]
  %v189 = vld [vmem:[%s1 + $0x29c] sm:$0xf]
  %v190 = vld [vmem:[%s1 + $0x2a0] sm:$0xf]
  %v191 = vld [vmem:[%s1 + $0x2a4] sm:$0xf]
  %v192 = vld [vmem:[%s1 + $0x2a8] sm:$0xf]
  %v193 = vld [vmem:[%s1 + $0x2ac] sm:$0xf]
  %v194 = vld [vmem:[%s1 + $0x2b0] sm:$0xf]
  %v195 = vld [vmem:[%s1 + $0x2b4] sm:$0xf]
  %v196 = vld [vmem:[%s1 + $0x2b8] sm:$0xf]
  %v197 = vld [vmem:[%s1 + $0x2bc] sm:$0xf]
  %v198 = vld [vmem:[%s1 + $0x2c0] sm:$0xf]
  %v199 = vld [vmem:[%s1 + $0x2c4] sm:$0xf]
  %v200 = vld [vmem:[%s1 + $0x2c8] sm:$0xf]
  %v201 = vld [vmem:[%s1 + $0x2cc] sm:$0xf]
  %v202 = vld [vmem:[%s1 + $0x2d0] sm:$0xf]
  %v203 = vld [vmem:[%s1 + $0x2d4] sm:$0xf]
  %v204 = vld [vmem:[%s1 + $0x2d8] sm:$0xf]
  %v205 = vld [vmem:[%s1 + $0x2dc] sm:$0xf]
  %v206 = vld [vmem:[%s1 + $0x2e0] sm:$0xf]
  %v207 = vld [vmem:[%s1 + $0x2e4] sm:$0xf]
  %v208 = vld [vmem:[%s1 + $0x2e8] sm:$0xf]
  %v209 = vld [vmem:[%s1 + $0x2ec] sm:$0xf]
  %v210 = vld [vmem:[%s1 + $0x2f0] sm:$0xf]
  %v211 = vld [vmem:[%s1 + $0x2f4] sm:$0xf]
  %v212 = vld [vmem:[%s1 + $0x2f8] sm:$0xf]
  %v213 = vld [vmem:[%s1 + $0x2fc] sm:$0xf]
  %v214 = vld [vmem:[%s1 + $0x300] sm:$0xf]
  %v215 = vld [vmem:[%s1 + $0x304] sm:$0xf]
  %v216 = vld [vmem:[%s1 + $0x308] sm:$0xf]
  %v217 = vld [vmem:[%s1 + $0x30c] sm:$0xf]
  %v218 = vld [vmem:[%s1 + $0x310] sm:$0xf]
  %v219 = vld [vmem:[%s1 + $0x314] sm:$0xf]
  %v220 = vld [vmem:[%s1 + $0x318] sm:$0xf]
  %v221 = vld [vmem:[%s1 + $0x31c] sm:$0xf]
  %v222 = vld [vmem:[%s2] sm:$0x1]
  %v224 = vlaneseq
  %v225 = vshrl.u32 %v224, 7
  %v226 = vsub.s32 0, %v225
  %v227 = vrot.slane %v222, %v226
  %v236 = vunpack.c.l.b16 %v15
  %v237 = vunpack.c.h.b16 %v15
  %v238 = vunpack.c.l.b16 %v16
  %v239 = vunpack.c.h.b16 %v16
  %v240 = vunpack.c.l.b16 %v17
  %v241 = vunpack.c.h.b16 %v17
  %v242 = vunpack.c.l.b16 %v18
  %v243 = vunpack.c.h.b16 %v18
  %v244 = vunpack.c.l.b16 %v19
  %v245 = vunpack.c.h.b16 %v19
  %v246 = vunpack.c.l.b16 %v20
  %v247 = vunpack.c.h.b16 %v20
  %v248 = vunpack.c.l.b16 %v21
  %v249 = vpack.c.b16 %v236, %v236
  %v250 = vpack.c.b16 %v237, %v237
  %v251 = vpack.c.b16 %v238, %v238
  %v252 = vpack.c.b16 %v239, %v239
  %v253 = vpack.c.b16 %v240, %v240
  %v254 = vpack.c.b16 %v241, %v241
  %v255 = vpack.c.b16 %v242, %v242
  %v256 = vpack.c.b16 %v243, %v243
  %v257 = vpack.c.b16 %v244, %v244
  %v258 = vpack.c.b16 %v245, %v245
  %v259 = vpack.c.b16 %v246, %v246
  %v260 = vpack.c.b16 %v247, %v247
  %v261 = vpack.c.b16 %v248, %v248
  %v474 = vunpack.c.l.b16 %v22
  %v475 = vunpack.c.l.b16 %v23
  %v476 = vunpack.c.l.b16 %v24
  %v477 = vunpack.c.l.b16 %v25
  %v478 = vunpack.c.l.b16 %v26
  %v479 = vunpack.c.l.b16 %v27
  %v480 = vunpack.c.l.b16 %v28
  %v481 = vunpack.c.l.b16 %v29
  %v482 = vunpack.c.l.b16 %v30
  %v483 = vunpack.c.l.b16 %v31
  %v484 = vunpack.c.l.b16 %v32
  %v485 = vunpack.c.l.b16 %v33
  %v486 = vunpack.c.l.b16 %v34
  %v487 = vunpack.c.l.b16 %v35
  %v488 = vunpack.c.l.b16 %v36
  %v489 = vunpack.c.l.b16 %v37
  %v490 = vunpack.c.l.b16 %v38
  %v491 = vunpack.c.l.b16 %v39
  %v492 = vunpack.c.l.b16 %v40
  %v493 = vunpack.c.l.b16 %v41
  %v494 = vunpack.c.l.b16 %v42
  %v495 = vunpack.c.l.b16 %v43
  %v496 = vunpack.c.l.b16 %v44
  %v497 = vunpack.c.l.b16 %v45
  %v498 = vunpack.c.l.b16 %v46
  %v499 = vunpack.c.l.b16 %v47
  %v500 = vunpack.c.l.b16 %v48
  %v501 = vunpack.c.l.b16 %v49
  %v502 = vunpack.c.l.b16 %v50
  %v503 = vunpack.c.l.b16 %v51
  %v504 = vunpack.c.l.b16 %v52
  %v505 = vunpack.c.l.b16 %v53
  %v506 = vunpack.c.l.b16 %v54
  %v507 = vunpack.c.l.b16 %v55
  %v508 = vunpack.c.l.b16 %v56
  %v509 = vunpack.c.l.b16 %v57
  %v510 = vunpack.c.l.b16 %v58
  %v511 = vunpack.c.l.b16 %v59
  %v512 = vunpack.c.l.b16 %v60
  %v513 = vunpack.c.l.b16 %v61
  %v514 = vunpack.c.l.b16 %v62
  %v515 = vunpack.c.l.b16 %v63
  %v516 = vunpack.c.l.b16 %v64
  %v517 = vunpack.c.l.b16 %v65
  %v518 = vunpack.c.l.b16 %v66
  %v519 = vunpack.c.l.b16 %v67
  %v520 = vunpack.c.l.b16 %v68
  %v521 = vunpack.c.l.b16 %v69
  %v522 = vunpack.c.l.b16 %v70
  %v523 = vunpack.c.l.b16 %v71
  %v524 = vunpack.c.l.b16 %v72
  %v525 = vunpack.c.l.b16 %v73
  %v526 = vunpack.c.l.b16 %v74
  %v527 = vunpack.c.l.b16 %v75
  %v528 = vunpack.c.l.b16 %v76
  %v529 = vunpack.c.l.b16 %v77
  %v530 = vunpack.c.l.b16 %v78
  %v531 = vunpack.c.l.b16 %v79
  %v532 = vunpack.c.l.b16 %v80
  %v533 = vunpack.c.l.b16 %v81
  %v534 = vunpack.c.l.b16 %v82
  %v535 = vunpack.c.l.b16 %v83
  %v536 = vunpack.c.l.b16 %v84
  %v537 = vunpack.c.l.b16 %v85
  %v538 = vunpack.c.l.b16 %v86
  %v539 = vunpack.c.l.b16 %v87
  %v540 = vunpack.c.l.b16 %v88
  %v541 = vunpack.c.l.b16 %v89
  %v542 = vunpack.c.l.b16 %v90
  %v543 = vunpack.c.l.b16 %v91
  %v544 = vunpack.c.l.b16 %v92
  %v545 = vunpack.c.l.b16 %v93
  %v546 = vunpack.c.l.b16 %v94
  %v547 = vunpack.c.l.b16 %v95
  %v548 = vunpack.c.l.b16 %v96
  %v549 = vunpack.c.l.b16 %v97
  %v550 = vunpack.c.l.b16 %v98
  %v551 = vunpack.c.l.b16 %v99
  %v552 = vunpack.c.l.b16 %v100
  %v553 = vunpack.c.l.b16 %v101
  %v554 = vunpack.c.l.b16 %v102
  %v555 = vunpack.c.l.b16 %v103
  %v556 = vunpack.c.l.b16 %v104
  %v557 = vunpack.c.l.b16 %v105
  %v558 = vunpack.c.l.b16 %v106
  %v559 = vunpack.c.l.b16 %v107
  %v560 = vunpack.c.l.b16 %v108
  %v561 = vunpack.c.l.b16 %v109
  %v562 = vunpack.c.l.b16 %v110
  %v563 = vunpack.c.l.b16 %v111
  %v564 = vunpack.c.l.b16 %v112
  %v565 = vunpack.c.l.b16 %v113
  %v566 = vunpack.c.l.b16 %v114
  %v567 = vunpack.c.l.b16 %v115
  %v568 = vunpack.c.l.b16 %v116
  %v569 = vunpack.c.l.b16 %v117
  %v570 = vunpack.c.l.b16 %v118
  %v571 = vunpack.c.l.b16 %v119
  %v572 = vunpack.c.l.b16 %v120
  %v573 = vunpack.c.l.b16 %v121
  %v574 = vunpack.c.l.b16 %v122
  %v575 = vunpack.c.l.b16 %v123
  %v576 = vunpack.c.l.b16 %v124
  %v577 = vunpack.c.l.b16 %v125
  %v578 = vunpack.c.l.b16 %v126
  %v579 = vunpack.c.l.b16 %v127
  %v580 = vunpack.c.l.b16 %v128
  %v581 = vunpack.c.l.b16 %v129
  %v582 = vunpack.c.l.b16 %v130
  %v583 = vunpack.c.l.b16 %v131
  %v584 = vunpack.c.l.b16 %v132
  %v585 = vunpack.c.l.b16 %v133
  %v586 = vunpack.c.l.b16 %v134
  %v587 = vunpack.c.l.b16 %v135
  %v588 = vunpack.c.l.b16 %v136
  %v589 = vunpack.c.l.b16 %v137
  %v590 = vunpack.c.l.b16 %v138
  %v591 = vunpack.c.l.b16 %v139
  %v592 = vunpack.c.l.b16 %v140
  %v593 = vunpack.c.l.b16 %v141
  %v594 = vunpack.c.l.b16 %v142
  %v595 = vunpack.c.l.b16 %v143
  %v596 = vunpack.c.l.b16 %v144
  %v597 = vunpack.c.l.b16 %v145
  %v598 = vunpack.c.l.b16 %v146
  %v599 = vunpack.c.l.b16 %v147
  %v600 = vunpack.c.l.b16 %v148
  %v601 = vunpack.c.l.b16 %v149
  %v602 = vunpack.c.l.b16 %v150
  %v603 = vunpack.c.l.b16 %v151
  %v604 = vunpack.c.l.b16 %v152
  %v605 = vunpack.c.l.b16 %v153
  %v606 = vunpack.c.l.b16 %v154
  %v607 = vunpack.c.l.b16 %v155
  %v608 = vunpack.c.l.b16 %v156
  %v609 = vunpack.c.l.b16 %v157
  %v610 = vunpack.c.l.b16 %v158
  %v611 = vunpack.c.l.b16 %v159
  %v612 = vunpack.c.l.b16 %v160
  %v613 = vunpack.c.l.b16 %v161
  %v614 = vunpack.c.l.b16 %v162
  %v615 = vunpack.c.l.b16 %v163
  %v616 = vunpack.c.l.b16 %v164
  %v617 = vunpack.c.l.b16 %v165
  %v618 = vunpack.c.l.b16 %v166
  %v619 = vunpack.c.l.b16 %v167
  %v620 = vunpack.c.l.b16 %v168
  %v621 = vunpack.c.l.b16 %v169
  %v622 = vunpack.c.l.b16 %v170
  %v623 = vunpack.c.l.b16 %v171
  %v624 = vunpack.c.l.b16 %v172
  %v625 = vunpack.c.l.b16 %v173
  %v626 = vunpack.c.l.b16 %v174
  %v627 = vunpack.c.l.b16 %v175
  %v628 = vunpack.c.l.b16 %v176
  %v629 = vunpack.c.l.b16 %v177
  %v630 = vunpack.c.l.b16 %v178
  %v631 = vunpack.c.l.b16 %v179
  %v632 = vunpack.c.l.b16 %v180
  %v633 = vunpack.c.l.b16 %v181
  %v634 = vunpack.c.l.b16 %v182
  %v635 = vunpack.c.l.b16 %v183
  %v636 = vunpack.c.l.b16 %v184
  %v637 = vunpack.c.l.b16 %v185
  %v638 = vunpack.c.l.b16 %v186
  %v639 = vunpack.c.l.b16 %v187
  %v640 = vunpack.c.l.b16 %v188
  %v641 = vunpack.c.l.b16 %v189
  %v642 = vunpack.c.l.b16 %v190
  %v643 = vunpack.c.l.b16 %v191
  %v644 = vunpack.c.l.b16 %v192
  %v645 = vunpack.c.l.b16 %v193
  %v646 = vunpack.c.l.b16 %v194
  %v647 = vunpack.c.l.b16 %v195
  %v648 = vunpack.c.l.b16 %v196
  %v649 = vunpack.c.l.b16 %v197
  %v650 = vunpack.c.l.b16 %v198
  %v651 = vunpack.c.l.b16 %v199
  %v652 = vunpack.c.l.b16 %v200
  %v653 = vunpack.c.l.b16 %v201
  %v654 = vunpack.c.l.b16 %v202
  %v655 = vunpack.c.l.b16 %v203
  %v656 = vunpack.c.l.b16 %v204
  %v657 = vunpack.c.l.b16 %v205
  %v658 = vunpack.c.l.b16 %v206
  %v659 = vunpack.c.l.b16 %v207
  %v660 = vunpack.c.l.b16 %v208
  %v661 = vunpack.c.l.b16 %v209
  %v662 = vunpack.c.l.b16 %v210
  %v663 = vunpack.c.l.b16 %v211
  %v664 = vunpack.c.l.b16 %v212
  %v665 = vunpack.c.l.b16 %v213
  %v666 = vunpack.c.l.b16 %v214
  %v667 = vunpack.c.l.b16 %v215
  %v668 = vunpack.c.l.b16 %v216
  %v669 = vunpack.c.l.b16 %v217
  %v670 = vunpack.c.l.b16 %v218
  %v671 = vunpack.c.l.b16 %v219
  %v672 = vunpack.c.l.b16 %v220
  %v673 = vunpack.c.l.b16 %v221
  %v674 = vpack.c.b16 %v475, %v474
  %v675 = vpack.c.b16 %v477, %v476
  %v676 = vpack.c.b16 %v479, %v478
  %v677 = vpack.c.b16 %v481, %v480
  %v678 = vpack.c.b16 %v483, %v482
  %v679 = vpack.c.b16 %v485, %v484
  %v680 = vpack.c.b16 %v487, %v486
  %v681 = vpack.c.b16 %v489, %v488
  %v682 = vpack.c.b16 %v491, %v490
  %v683 = vpack.c.b16 %v493, %v492
  %v684 = vpack.c.b16 %v495, %v494
  %v685 = vpack.c.b16 %v497, %v496
  %v686 = vpack.c.b16 %v499, %v498
  %v687 = vpack.c.b16 %v501, %v500
  %v688 = vpack.c.b16 %v503, %v502
  %v689 = vpack.c.b16 %v505, %v504
  %v690 = vpack.c.b16 %v507, %v506
  %v691 = vpack.c.b16 %v509, %v508
  %v692 = vpack.c.b16 %v511, %v510
  %v693 = vpack.c.b16 %v513, %v512
  %v694 = vpack.c.b16 %v515, %v514
  %v695 = vpack.c.b16 %v517, %v516
  %v696 = vpack.c.b16 %v519, %v518
  %v697 = vpack.c.b16 %v521, %v520
  %v698 = vpack.c.b16 %v523, %v522
  %v699 = vpack.c.b16 %v525, %v524
  %v700 = vpack.c.b16 %v527, %v526
  %v701 = vpack.c.b16 %v529, %v528
  %v702 = vpack.c.b16 %v531, %v530
  %v703 = vpack.c.b16 %v533, %v532
  %v704 = vpack.c.b16 %v535, %v534
  %v705 = vpack.c.b16 %v537, %v536
  %v706 = vpack.c.b16 %v539, %v538
  %v707 = vpack.c.b16 %v541, %v540
  %v708 = vpack.c.b16 %v543, %v542
  %v709 = vpack.c.b16 %v545, %v544
  %v710 = vpack.c.b16 %v547, %v546
  %v711 = vpack.c.b16 %v549, %v548
  %v712 = vpack.c.b16 %v551, %v550
  %v713 = vpack.c.b16 %v553, %v552
  %v714 = vpack.c.b16 %v555, %v554
  %v715 = vpack.c.b16 %v557, %v556
  %v716 = vpack.c.b16 %v559, %v558
  %v717 = vpack.c.b16 %v561, %v560
  %v718 = vpack.c.b16 %v563, %v562
  %v719 = vpack.c.b16 %v565, %v564
  %v720 = vpack.c.b16 %v567, %v566
  %v721 = vpack.c.b16 %v569, %v568
  %v722 = vpack.c.b16 %v571, %v570
  %v723 = vpack.c.b16 %v573, %v572
  %v724 = vpack.c.b16 %v575, %v574
  %v725 = vpack.c.b16 %v577, %v576
  %v726 = vpack.c.b16 %v579, %v578
  %v727 = vpack.c.b16 %v581, %v580
  %v728 = vpack.c.b16 %v583, %v582
  %v729 = vpack.c.b16 %v585, %v584
  %v730 = vpack.c.b16 %v587, %v586
  %v731 = vpack.c.b16 %v589, %v588
  %v732 = vpack.c.b16 %v591, %v590
  %v733 = vpack.c.b16 %v593, %v592
  %v734 = vpack.c.b16 %v595, %v594
  %v735 = vpack.c.b16 %v597, %v596
  %v736 = vpack.c.b16 %v599, %v598
  %v737 = vpack.c.b16 %v601, %v600
  %v738 = vpack.c.b16 %v603, %v602
  %v739 = vpack.c.b16 %v605, %v604
  %v740 = vpack.c.b16 %v607, %v606
  %v741 = vpack.c.b16 %v609, %v608
  %v742 = vpack.c.b16 %v611, %v610
  %v743 = vpack.c.b16 %v613, %v612
  %v744 = vpack.c.b16 %v615, %v614
  %v745 = vpack.c.b16 %v617, %v616
  %v746 = vpack.c.b16 %v619, %v618
  %v747 = vpack.c.b16 %v621, %v620
  %v748 = vpack.c.b16 %v623, %v622
  %v749 = vpack.c.b16 %v625, %v624
  %v750 = vpack.c.b16 %v627, %v626
  %v751 = vpack.c.b16 %v629, %v628
  %v752 = vpack.c.b16 %v631, %v630
  %v753 = vpack.c.b16 %v633, %v632
  %v754 = vpack.c.b16 %v635, %v634
  %v755 = vpack.c.b16 %v637, %v636
  %v756 = vpack.c.b16 %v639, %v638
  %v757 = vpack.c.b16 %v641, %v640
  %v758 = vpack.c.b16 %v643, %v642
  %v759 = vpack.c.b16 %v645, %v644
  %v760 = vpack.c.b16 %v647, %v646
  %v761 = vpack.c.b16 %v649, %v648
  %v762 = vpack.c.b16 %v651, %v650
  %v763 = vpack.c.b16 %v653, %v652
  %v764 = vpack.c.b16 %v655, %v654
  %v765 = vpack.c.b16 %v657, %v656
  %v766 = vpack.c.b16 %v659, %v658
  %v767 = vpack.c.b16 %v661, %v660
  %v768 = vpack.c.b16 %v663, %v662
  %v769 = vpack.c.b16 %v665, %v664
  %v770 = vpack.c.b16 %v667, %v666
  %v771 = vpack.c.b16 %v669, %v668
  %v772 = vpack.c.b16 %v671, %v670
  %v773 = vpack.c.b16 %v673, %v672
  %vm874 = vcmask 523264
  %v876 = vsel %vm874, %v261, 0
  %878 = vmatprep.subr.bf16.mxu0 0
  %879 = vmatpush1.bf16.msra.mxu0 %v681
  %880 = vmatprep.subr.bf16.mxu0 0
  %881 = vmatpush1.bf16.msra.mxu0 %v680
  %882 = vmatprep.subr.bf16.mxu0 0
  %883 = vmatpush1.bf16.msra.mxu0 %v679
  %884 = vmatprep.subr.bf16.mxu0 0
  %885 = vmatpush1.bf16.msra.mxu0 %v678
  %886 = vmatprep.subr.bf16.mxu0 0
  %887 = vmatpush1.bf16.msra.mxu0 %v677
  %888 = vmatprep.subr.bf16.mxu0 0
  %889 = vmatpush1.bf16.msra.mxu0 %v676
  %890 = vmatprep.subr.bf16.mxu0 0
  %891 = vmatpush1.bf16.msra.mxu0 %v675
  %892 = vmatprep.subr.bf16.mxu0 0
  %893 = vmatpush1.bf16.msra.mxu0 %v674
  %894 = vmatprep.subr.bf16.mxu0 0
  %895 = vmatpush2.bf16.msra.mxu0 %v689
  %896 = vmatprep.subr.bf16.mxu0 0
  %897 = vmatpush2.bf16.msra.mxu0 %v688
  %898 = vmatprep.subr.bf16.mxu0 0
  %899 = vmatpush2.bf16.msra.mxu0 %v687
  %900 = vmatprep.subr.bf16.mxu0 0
  %901 = vmatpush2.bf16.msra.mxu0 %v686
  %902 = vmatprep.subr.bf16.mxu0 0
  %903 = vmatpush2.bf16.msra.mxu0 %v685
  %904 = vmatprep.subr.bf16.mxu0 0
  %905 = vmatpush2.bf16.msra.mxu0 %v684
  %906 = vmatprep.subr.bf16.mxu0 0
  %907 = vmatpush2.bf16.msra.mxu0 %v683
  %908 = vmatprep.subr.bf16.mxu0 0
  %909 = vmatpush2.bf16.msra.mxu0 %v682
  %910 = vmatprep.mubr.bf16.mxu0 %v250
  %911 = vmatmul.mubr.bf16.gmra.mxu0 %v249
  %v912 = vpop.f32.mrf.mxu0
  %v913 = vadd.f32 %v227, %v912
  %v914 = vpop.f32.mrf.mxu0
  %v915 = vpop.f32.mrf.mxu0
  %v916 = vpop.f32.mrf.mxu0
  %917 = vdwg.mxu0
  %918 = vmatprep.subr.bf16.mxu0 0
  %919 = vmatpush1.bf16.msra.mxu0 %v697
  %920 = vmatprep.subr.bf16.mxu0 0
  %921 = vmatpush1.bf16.msra.mxu0 %v696
  %922 = vmatprep.subr.bf16.mxu0 0
  %923 = vmatpush1.bf16.msra.mxu0 %v695
  %924 = vmatprep.subr.bf16.mxu0 0
  %925 = vmatpush1.bf16.msra.mxu0 %v694
  %926 = vmatprep.subr.bf16.mxu0 0
  %927 = vmatpush1.bf16.msra.mxu0 %v693
  %928 = vmatprep.subr.bf16.mxu0 0
  %929 = vmatpush1.bf16.msra.mxu0 %v692
  %930 = vmatprep.subr.bf16.mxu0 0
  %931 = vmatpush1.bf16.msra.mxu0 %v691
  %932 = vmatprep.subr.bf16.mxu0 0
  %933 = vmatpush1.bf16.msra.mxu0 %v690
  %934 = vmatprep.subr.bf16.mxu0 0
  %935 = vmatpush2.bf16.msra.mxu0 %v705
  %936 = vmatprep.subr.bf16.mxu0 0
  %937 = vmatpush2.bf16.msra.mxu0 %v704
  %938 = vmatprep.subr.bf16.mxu0 0
  %939 = vmatpush2.bf16.msra.mxu0 %v703
  %940 = vmatprep.subr.bf16.mxu0 0
  %941 = vmatpush2.bf16.msra.mxu0 %v702
  %942 = vmatprep.subr.bf16.mxu0 0
  %943 = vmatpush2.bf16.msra.mxu0 %v701
  %944 = vmatprep.subr.bf16.mxu0 0
  %945 = vmatpush2.bf16.msra.mxu0 %v700
  %946 = vmatprep.subr.bf16.mxu0 0
  %947 = vmatpush2.bf16.msra.mxu0 %v699
  %948 = vmatprep.subr.bf16.mxu0 0
  %949 = vmatpush2.bf16.msra.mxu0 %v698
  %950 = vmatprep.mubr.bf16.mxu0 %v252
  %951 = vmatmul.mubr.bf16.gmra.mxu0 %v251
  %v952 = vpop.f32.mrf.mxu0
  %v953 = vadd.f32 %v913, %v952
  %v954 = vpop.f32.mrf.mxu0
  %v955 = vpop.f32.mrf.mxu0
  %v956 = vpop.f32.mrf.mxu0
  %957 = vdwg.mxu0
  %958 = vmatprep.subr.bf16.mxu0 0
  %959 = vmatpush1.bf16.msra.mxu0 %v713
  %960 = vmatprep.subr.bf16.mxu0 0
  %961 = vmatpush1.bf16.msra.mxu0 %v712
  %962 = vmatprep.subr.bf16.mxu0 0
  %963 = vmatpush1.bf16.msra.mxu0 %v711
  %964 = vmatprep.subr.bf16.mxu0 0
  %965 = vmatpush1.bf16.msra.mxu0 %v710
  %966 = vmatprep.subr.bf16.mxu0 0
  %967 = vmatpush1.bf16.msra.mxu0 %v709
  %968 = vmatprep.subr.bf16.mxu0 0
  %969 = vmatpush1.bf16.msra.mxu0 %v708
  %970 = vmatprep.subr.bf16.mxu0 0
  %971 = vmatpush1.bf16.msra.mxu0 %v707
  %972 = vmatprep.subr.bf16.mxu0 0
  %973 = vmatpush1.bf16.msra.mxu0 %v706
  %974 = vmatprep.subr.bf16.mxu0 0
  %975 = vmatpush2.bf16.msra.mxu0 %v721
  %976 = vmatprep.subr.bf16.mxu0 0
  %977 = vmatpush2.bf16.msra.mxu0 %v720
  %978 = vmatprep.subr.bf16.mxu0 0
  %979 = vmatpush2.bf16.msra.mxu0 %v719
  %980 = vmatprep.subr.bf16.mxu0 0
  %981 = vmatpush2.bf16.msra.mxu0 %v718
  %982 = vmatprep.subr.bf16.mxu0 0
  %983 = vmatpush2.bf16.msra.mxu0 %v717
  %984 = vmatprep.subr.bf16.mxu0 0
  %985 = vmatpush2.bf16.msra.mxu0 %v716
  %986 = vmatprep.subr.bf16.mxu0 0
  %987 = vmatpush2.bf16.msra.mxu0 %v715
  %988 = vmatprep.subr.bf16.mxu0 0
  %989 = vmatpush2.bf16.msra.mxu0 %v714
  %990 = vmatprep.mubr.bf16.mxu0 %v254
  %991 = vmatmul.mubr.bf16.gmra.mxu0 %v253
  %v992 = vpop.f32.mrf.mxu0
  %v993 = vadd.f32 %v953, %v992
  %v994 = vpop.f32.mrf.mxu0
  %v995 = vpop.f32.mrf.mxu0
  %v996 = vpop.f32.mrf.mxu0
  %997 = vdwg.mxu0
  %998 = vmatprep.subr.bf16.mxu0 0
  %999 = vmatpush1.bf16.msra.mxu0 %v729
  %1000 = vmatprep.subr.bf16.mxu0 0
  %1001 = vmatpush1.bf16.msra.mxu0 %v728
  %1002 = vmatprep.subr.bf16.mxu0 0
  %1003 = vmatpush1.bf16.msra.mxu0 %v727
  %1004 = vmatprep.subr.bf16.mxu0 0
  %1005 = vmatpush1.bf16.msra.mxu0 %v726
  %1006 = vmatprep.subr.bf16.mxu0 0
  %1007 = vmatpush1.bf16.msra.mxu0 %v725
  %1008 = vmatprep.subr.bf16.mxu0 0
  %1009 = vmatpush1.bf16.msra.mxu0 %v724
  %1010 = vmatprep.subr.bf16.mxu0 0
  %1011 = vmatpush1.bf16.msra.mxu0 %v723
  %1012 = vmatprep.subr.bf16.mxu0 0
  %1013 = vmatpush1.bf16.msra.mxu0 %v722
  %1014 = vmatprep.subr.bf16.mxu0 0
  %1015 = vmatpush2.bf16.msra.mxu0 %v737
  %1016 = vmatprep.subr.bf16.mxu0 0
  %1017 = vmatpush2.bf16.msra.mxu0 %v736
  %1018 = vmatprep.subr.bf16.mxu0 0
  %1019 = vmatpush2.bf16.msra.mxu0 %v735
  %1020 = vmatprep.subr.bf16.mxu0 0
  %1021 = vmatpush2.bf16.msra.mxu0 %v734
  %1022 = vmatprep.subr.bf16.mxu0 0
  %1023 = vmatpush2.bf16.msra.mxu0 %v733
  %1024 = vmatprep.subr.bf16.mxu0 0
  %1025 = vmatpush2.bf16.msra.mxu0 %v732
  %1026 = vmatprep.subr.bf16.mxu0 0
  %1027 = vmatpush2.bf16.msra.mxu0 %v731
  %1028 = vmatprep.subr.bf16.mxu0 0
  %1029 = vmatpush2.bf16.msra.mxu0 %v730
  %1030 = vmatprep.mubr.bf16.mxu0 %v256
  %1031 = vmatmul.mubr.bf16.gmra.mxu0 %v255
  %v1032 = vpop.f32.mrf.mxu0
  %v1033 = vadd.f32 %v993, %v1032
  %v1034 = vpop.f32.mrf.mxu0
  %v1035 = vpop.f32.mrf.mxu0
  %v1036 = vpop.f32.mrf.mxu0
  %1037 = vdwg.mxu0
  %1038 = vmatprep.subr.bf16.mxu0 0
  %1039 = vmatpush1.bf16.msra.mxu0 %v745
  %1040 = vmatprep.subr.bf16.mxu0 0
  %1041 = vmatpush1.bf16.msra.mxu0 %v744
  %1042 = vmatprep.subr.bf16.mxu0 0
  %1043 = vmatpush1.bf16.msra.mxu0 %v743
  %1044 = vmatprep.subr.bf16.mxu0 0
  %1045 = vmatpush1.bf16.msra.mxu0 %v742
  %1046 = vmatprep.subr.bf16.mxu0 0
  %1047 = vmatpush1.bf16.msra.mxu0 %v741
  %1048 = vmatprep.subr.bf16.mxu0 0
  %1049 = vmatpush1.bf16.msra.mxu0 %v740
  %1050 = vmatprep.subr.bf16.mxu0 0
  %1051 = vmatpush1.bf16.msra.mxu0 %v739
  %1052 = vmatprep.subr.bf16.mxu0 0
  %1053 = vmatpush1.bf16.msra.mxu0 %v738
  %1054 = vmatprep.subr.bf16.mxu0 0
  %1055 = vmatpush2.bf16.msra.mxu0 %v753
  %1056 = vmatprep.subr.bf16.mxu0 0
  %1057 = vmatpush2.bf16.msra.mxu0 %v752
  %1058 = vmatprep.subr.bf16.mxu0 0
  %1059 = vmatpush2.bf16.msra.mxu0 %v751
  %1060 = vmatprep.subr.bf16.mxu0 0
  %1061 = vmatpush2.bf16.msra.mxu0 %v750
  %1062 = vmatprep.subr.bf16.mxu0 0
  %1063 = vmatpush2.bf16.msra.mxu0 %v749
  %1064 = vmatprep.subr.bf16.mxu0 0
  %1065 = vmatpush2.bf16.msra.mxu0 %v748
  %1066 = vmatprep.subr.bf16.mxu0 0
  %1067 = vmatpush2.bf16.msra.mxu0 %v747
  %1068 = vmatprep.subr.bf16.mxu0 0
  %1069 = vmatpush2.bf16.msra.mxu0 %v746
  %1070 = vmatprep.mubr.bf16.mxu0 %v258
  %1071 = vmatmul.mubr.bf16.gmra.mxu0 %v257
  %v1072 = vpop.f32.mrf.mxu0
  %v1073 = vadd.f32 %v1033, %v1072
  %v1074 = vpop.f32.mrf.mxu0
  %v1075 = vpop.f32.mrf.mxu0
  %v1076 = vpop.f32.mrf.mxu0
  %1077 = vdwg.mxu0
  %1078 = vmatprep.subr.bf16.mxu0 0
  %1079 = vmatpush1.bf16.msra.mxu0 %v761
  %1080 = vmatprep.subr.bf16.mxu0 0
  %1081 = vmatpush1.bf16.msra.mxu0 %v760
  %1082 = vmatprep.subr.bf16.mxu0 0
  %1083 = vmatpush1.bf16.msra.mxu0 %v759
  %1084 = vmatprep.subr.bf16.mxu0 0
  %1085 = vmatpush1.bf16.msra.mxu0 %v758
  %1086 = vmatprep.subr.bf16.mxu0 0
  %1087 = vmatpush1.bf16.msra.mxu0 %v757
  %1088 = vmatprep.subr.bf16.mxu0 0
  %1089 = vmatpush1.bf16.msra.mxu0 %v756
  %1090 = vmatprep.subr.bf16.mxu0 0
  %1091 = vmatpush1.bf16.msra.mxu0 %v755
  %1092 = vmatprep.subr.bf16.mxu0 0
  %1093 = vmatpush1.bf16.msra.mxu0 %v754
  %1094 = vmatprep.subr.bf16.mxu0 0
  %1095 = vmatpush2.bf16.msra.mxu0 %v769
  %1096 = vmatprep.subr.bf16.mxu0 0
  %1097 = vmatpush2.bf16.msra.mxu0 %v768
  %1098 = vmatprep.subr.bf16.mxu0 0
  %1099 = vmatpush2.bf16.msra.mxu0 %v767
  %1100 = vmatprep.subr.bf16.mxu0 0
  %1101 = vmatpush2.bf16.msra.mxu0 %v766
  %1102 = vmatprep.subr.bf16.mxu0 0
  %1103 = vmatpush2.bf16.msra.mxu0 %v765
  %1104 = vmatprep.subr.bf16.mxu0 0
  %1105 = vmatpush2.bf16.msra.mxu0 %v764
  %1106 = vmatprep.subr.bf16.mxu0 0
  %1107 = vmatpush2.bf16.msra.mxu0 %v763
  %1108 = vmatprep.subr.bf16.mxu0 0
  %1109 = vmatpush2.bf16.msra.mxu0 %v762
  %1110 = vmatprep.mubr.bf16.mxu0 %v260
  %1111 = vmatmul.mubr.bf16.gmra.mxu0 %v259
  %v1112 = vpop.f32.mrf.mxu0
  %v1113 = vadd.f32 %v1073, %v1112
  %v1114 = vpop.f32.mrf.mxu0
  %v1115 = vpop.f32.mrf.mxu0
  %v1116 = vpop.f32.mrf.mxu0
  %1117 = vdwg.mxu0
  %1118 = vmatprep.subr.bf16.mxu0 0
  %1119 = vmatpush1.bf16.msra.mxu0 0
  %1120 = vmatprep.subr.bf16.mxu0 0
  %1121 = vmatpush1.bf16.msra.mxu0 0
  %1122 = vmatprep.subr.bf16.mxu0 0
  %1123 = vmatpush1.bf16.msra.mxu0 0
  %1124 = vmatprep.subr.bf16.mxu0 0
  %1125 = vmatpush1.bf16.msra.mxu0 0
  %1126 = vmatprep.subr.bf16.mxu0 0
  %1127 = vmatpush1.bf16.msra.mxu0 %v773
  %1128 = vmatprep.subr.bf16.mxu0 0
  %1129 = vmatpush1.bf16.msra.mxu0 %v772
  %1130 = vmatprep.subr.bf16.mxu0 0
  %1131 = vmatpush1.bf16.msra.mxu0 %v771
  %1132 = vmatprep.subr.bf16.mxu0 0
  %1133 = vmatpush1.bf16.msra.mxu0 %v770
  %1134 = vmatprep.subr.bf16.mxu0 0
  %1135 = vmatpush2.bf16.msra.mxu0 0
  %1136 = vmatprep.subr.bf16.mxu0 0
  %1137 = vmatpush2.bf16.msra.mxu0 0
  %1138 = vmatprep.subr.bf16.mxu0 0
  %1139 = vmatpush2.bf16.msra.mxu0 0
  %1140 = vmatprep.subr.bf16.mxu0 0
  %1141 = vmatpush2.bf16.msra.mxu0 0
  %1142 = vmatprep.subr.bf16.mxu0 0
  %1143 = vmatpush2.bf16.msra.mxu0 0
  %1144 = vmatprep.subr.bf16.mxu0 0
  %1145 = vmatpush2.bf16.msra.mxu0 0
  %1146 = vmatprep.subr.bf16.mxu0 0
  %1147 = vmatpush2.bf16.msra.mxu0 0
  %1148 = vmatprep.subr.bf16.mxu0 0
  %1149 = vmatpush2.bf16.msra.mxu0 0
  %1150 = vmatprep.mubr.bf16.mxu0 0
  %1151 = vmatmul.mubr.bf16.gmra.mxu0 %v876
  %v1152 = vpop.f32.mrf.mxu0
  %v1153 = vadd.f32 %v1113, %v1152
  %v1154 = vpop.f32.mrf.mxu0
  %v1155 = vpop.f32.mrf.mxu0
  %v1156 = vpop.f32.mrf.mxu0
  %1157 = vdwg.mxu0
  %1158 = vst [vmem:[%s3] sm:$0xff] %v1153
  // Predicated region
  $region14: #{net2_forward.3} parent=0 // pred_check
    _
  $region15: #{net2_forward.3} parent=0 // pred_check_branch
    %1160 = sbr.rel (0) target = $region17
  $region16: #{net2_forward.3} parent=0 // pred_region
    _
  $region17: #{net2_forward.3} parent=0 // pred_fallthru
    _
  // Predicated region
  $region18: #{net2_forward.3} parent=0 // pred_check
    _
  $region19: #{net2_forward.3} parent=0 // pred_check_branch
    %1162 = sbr.rel (0) target = $region21
  $region20: #{net2_forward.3} parent=0 // pred_region
    _
  $region21: #{net2_forward.3} parent=0 // pred_fallthru
    _

// kernel: net2_forward.2
$region0: #{net2_forward.2}
  #allocation0 [shape = 'u32[]', space=smem, size = 0x4, offset = 0x4, fixed_abs, tag = 'smem constant byte address 0x4 - core index']
  #allocation1 [shape = 'u32[144,128]{1,0:T(1,128)}', space=vmem, size = 0x12000, scoped, tag = 'internal scratch']
  %s0 = inlined_call_operand.vmem [shape: bf16[56,128], index: 0, kind: input, shape index: {}]
  %s1 = inlined_call_operand.vmem [shape: bf16[128,2048], index: 1, kind: input, shape index: {}]
  %s2 = inlined_call_operand.vmem [shape: f32[1,512], index: 2, kind: input, shape index: {}]
  %s3 = inlined_call_operand.vmem [shape: bf16[512,256], index: 3, kind: input, shape index: {}]
  %s4 = inlined_call_operand.vmem [shape: f32[1,64], index: 4, kind: input, shape index: {}]
  %s5 = inlined_call_operand.vmem [shape: bf16[56,64], index: 5, kind: output, shape index: {}]
  %s6 = sld [smem:[#allocation0]]
  $region30: #{net2_forward.2} parent=0
    _
  %s8 = ssub.s32 1, %s6
  %s9 = scalar_select 0, %s8, %s6
  // Predicated region
  $region2: #{net2_forward.2} parent=0 // pred_check
    _
  $region3: #{net2_forward.2} parent=0 // pred_check_branch
    %11 = sbr.rel (0) target = $region5
  $region4: #{net2_forward.2} parent=0 // pred_region
    _
  $region5: #{net2_forward.2} parent=0 // pred_fallthru
    _
  // Predicated region
  $region6: #{net2_forward.2} parent=0 // pred_check
    _
  $region7: #{net2_forward.2} parent=0 // pred_check_branch
    %13 = sbr.rel (0) target = $region9
  $region8: #{net2_forward.2} parent=0 // pred_region
    _
  $region9: #{net2_forward.2} parent=0 // pred_fallthru
    _
  // Predicated region
  $region10: #{net2_forward.2} parent=0 // pred_check
    _
  $region11: #{net2_forward.2} parent=0 // pred_check_branch
    %15 = sbr.rel (0) target = $region13
  $region12: #{net2_forward.2} parent=0 // pred_region
    _
  $region13: #{net2_forward.2} parent=0 // pred_fallthru
    _
  // Predicated region
  $region14: #{net2_forward.2} parent=0 // pred_check
    _
  $region15: #{net2_forward.2} parent=0 // pred_check_branch
    %17 = sbr.rel (0) target = $region17
  $region16: #{net2_forward.2} parent=0 // pred_region
    _
  $region17: #{net2_forward.2} parent=0 // pred_fallthru
    _
  // Predicated region
  $region18: #{net2_forward.2} parent=0 // pred_check
    _
  $region19: #{net2_forward.2} parent=0 // pred_check_branch
    %19 = sbr.rel (0) target = $region21
  $region20: #{net2_forward.2} parent=0 // pred_region
    _
  $region21: #{net2_forward.2} parent=0 // pred_fallthru
    _
  %v21 = vld [vmem:[%s0] sm:$0xf]
  %v22 = vld [vmem:[%s0 + $0x4] sm:$0xf]
  %v23 = vld [vmem:[%s0 + $0x8] sm:$0xf]
  %v24 = vld [vmem:[%s0 + $0xc] sm:$0xf]
  %v25 = vld [vmem:[%s0 + $0x10] sm:$0xf]
  %v26 = vld [vmem:[%s0 + $0x14] sm:$0xf]
  %v27 = vld [vmem:[%s0 + $0x18] sm:$0xf]
  %v28 = vld [vmem:[%s1] sm:$0xff]
  %v29 = vld [vmem:[%s1 + $0x8] sm:$0xff]
  %v30 = vld [vmem:[%s1 + $0x10] sm:$0xff]
  %v31 = vld [vmem:[%s1 + $0x18] sm:$0xff]
  %v32 = vld [vmem:[%s1 + $0x20] sm:$0xff]
  %v33 = vld [vmem:[%s1 + $0x28] sm:$0xff]
  %v34 = vld [vmem:[%s1 + $0x30] sm:$0xff]
  %v35 = vld [vmem:[%s1 + $0x38] sm:$0xff]
  %v36 = vld [vmem:[%s1 + $0x40] sm:$0xff]
  %v37 = vld [vmem:[%s1 + $0x48] sm:$0xff]
  %v38 = vld [vmem:[%s1 + $0x50] sm:$0xff]
  %v39 = vld [vmem:[%s1 + $0x58] sm:$0xff]
  %v40 = vld [vmem:[%s1 + $0x60] sm:$0xff]
  %v41 = vld [vmem:[%s1 + $0x68] sm:$0xff]
  %v42 = vld [vmem:[%s1 + $0x70] sm:$0xff]
  %v43 = vld [vmem:[%s1 + $0x78] sm:$0xff]
  %v44 = vld [vmem:[%s1 + $0x80] sm:$0xff]
  %v45 = vld [vmem:[%s1 + $0x88] sm:$0xff]
  %v46 = vld [vmem:[%s1 + $0x90] sm:$0xff]
  %v47 = vld [vmem:[%s1 + $0x98] sm:$0xff]
  %v48 = vld [vmem:[%s1 + $0xa0] sm:$0xff]
  %v49 = vld [vmem:[%s1 + $0xa8] sm:$0xff]
  %v50 = vld [vmem:[%s1 + $0xb0] sm:$0xff]
  %v51 = vld [vmem:[%s1 + $0xb8] sm:$0xff]
  %v52 = vld [vmem:[%s1 + $0xc0] sm:$0xff]
  %v53 = vld [vmem:[%s1 + $0xc8] sm:$0xff]
  %v54 = vld [vmem:[%s1 + $0xd0] sm:$0xff]
  %v55 = vld [vmem:[%s1 + $0xd8] sm:$0xff]
  %v56 = vld [vmem:[%s1 + $0xe0] sm:$0xff]
  %v57 = vld [vmem:[%s1 + $0xe8] sm:$0xff]
  %v58 = vld [vmem:[%s1 + $0xf0] sm:$0xff]
  %v59 = vld [vmem:[%s1 + $0xf8] sm:$0xff]
  %v60 = vld [vmem:[%s1 + $0x100] sm:$0xff]
  %v61 = vld [vmem:[%s1 + $0x108] sm:$0xff]
  %v62 = vld [vmem:[%s1 + $0x110] sm:$0xff]
  %v63 = vld [vmem:[%s1 + $0x118] sm:$0xff]
  %v64 = vld [vmem:[%s1 + $0x120] sm:$0xff]
  %v65 = vld [vmem:[%s1 + $0x128] sm:$0xff]
  %v66 = vld [vmem:[%s1 + $0x130] sm:$0xff]
  %v67 = vld [vmem:[%s1 + $0x138] sm:$0xff]
  %v68 = vld [vmem:[%s1 + $0x140] sm:$0xff]
  %v69 = vld [vmem:[%s1 + $0x148] sm:$0xff]
  %v70 = vld [vmem:[%s1 + $0x150] sm:$0xff]
  %v71 = vld [vmem:[%s1 + $0x158] sm:$0xff]
  %v72 = vld [vmem:[%s1 + $0x160] sm:$0xff]
  %v73 = vld [vmem:[%s1 + $0x168] sm:$0xff]
  %v74 = vld [vmem:[%s1 + $0x170] sm:$0xff]
  %v75 = vld [vmem:[%s1 + $0x178] sm:$0xff]
  %v76 = vld [vmem:[%s1 + $0x180] sm:$0xff]
  %v77 = vld [vmem:[%s1 + $0x188] sm:$0xff]
  %v78 = vld [vmem:[%s1 + $0x190] sm:$0xff]
  %v79 = vld [vmem:[%s1 + $0x198] sm:$0xff]
  %v80 = vld [vmem:[%s1 + $0x1a0] sm:$0xff]
  %v81 = vld [vmem:[%s1 + $0x1a8] sm:$0xff]
  %v82 = vld [vmem:[%s1 + $0x1b0] sm:$0xff]
  %v83 = vld [vmem:[%s1 + $0x1b8] sm:$0xff]
  %v84 = vld [vmem:[%s1 + $0x1c0] sm:$0xff]
  %v85 = vld [vmem:[%s1 + $0x1c8] sm:$0xff]
  %v86 = vld [vmem:[%s1 + $0x1d0] sm:$0xff]
  %v87 = vld [vmem:[%s1 + $0x1d8] sm:$0xff]
  %v88 = vld [vmem:[%s1 + $0x1e0] sm:$0xff]
  %v89 = vld [vmem:[%s1 + $0x1e8] sm:$0xff]
  %v90 = vld [vmem:[%s1 + $0x1f0] sm:$0xff]
  %v91 = vld [vmem:[%s1 + $0x1f8] sm:$0xff]
  %v92 = vld [vmem:[%s1 + $0x200] sm:$0xff]
  %v93 = vld [vmem:[%s1 + $0x208] sm:$0xff]
  %v94 = vld [vmem:[%s1 + $0x210] sm:$0xff]
  %v95 = vld [vmem:[%s1 + $0x218] sm:$0xff]
  %v96 = vld [vmem:[%s1 + $0x220] sm:$0xff]
  %v97 = vld [vmem:[%s1 + $0x228] sm:$0xff]
  %v98 = vld [vmem:[%s1 + $0x230] sm:$0xff]
  %v99 = vld [vmem:[%s1 + $0x238] sm:$0xff]
  %v100 = vld [vmem:[%s1 + $0x240] sm:$0xff]
  %v101 = vld [vmem:[%s1 + $0x248] sm:$0xff]
  %v102 = vld [vmem:[%s1 + $0x250] sm:$0xff]
  %v103 = vld [vmem:[%s1 + $0x258] sm:$0xff]
  %v104 = vld [vmem:[%s1 + $0x260] sm:$0xff]
  %v105 = vld [vmem:[%s1 + $0x268] sm:$0xff]
  %v106 = vld [vmem:[%s1 + $0x270] sm:$0xff]
  %v107 = vld [vmem:[%s1 + $0x278] sm:$0xff]
  %v108 = vld [vmem:[%s1 + $0x280] sm:$0xff]
  %v109 = vld [vmem:[%s1 + $0x288] sm:$0xff]
  %v110 = vld [vmem:[%s1 + $0x290] sm:$0xff]
  %v111 = vld [vmem:[%s1 + $0x298] sm:$0xff]
  %v112 = vld [vmem:[%s1 + $0x2a0] sm:$0xff]
  %v113 = vld [vmem:[%s1 + $0x2a8] sm:$0xff]
  %v114 = vld [vmem:[%s1 + $0x2b0] sm:$0xff]
  %v115 = vld [vmem:[%s1 + $0x2b8] sm:$0xff]
  %v116 = vld [vmem:[%s1 + $0x2c0] sm:$0xff]
  %v117 = vld [vmem:[%s1 + $0x2c8] sm:$0xff]
  %v118 = vld [vmem:[%s1 + $0x2d0] sm:$0xff]
  %v119 = vld [vmem:[%s1 + $0x2d8] sm:$0xff]
  %v120 = vld [vmem:[%s1 + $0x2e0] sm:$0xff]
  %v121 = vld [vmem:[%s1 + $0x2e8] sm:$0xff]
  %v122 = vld [vmem:[%s1 + $0x2f0] sm:$0xff]
  %v123 = vld [vmem:[%s1 + $0x2f8] sm:$0xff]
  %v124 = vld [vmem:[%s1 + $0x300] sm:$0xff]
  %v125 = vld [vmem:[%s1 + $0x308] sm:$0xff]
  %v126 = vld [vmem:[%s1 + $0x310] sm:$0xff]
  %v127 = vld [vmem:[%s1 + $0x318] sm:$0xff]
  %v128 = vld [vmem:[%s1 + $0x320] sm:$0xff]
  %v129 = vld [vmem:[%s1 + $0x328] sm:$0xff]
  %v130 = vld [vmem:[%s1 + $0x330] sm:$0xff]
  %v131 = vld [vmem:[%s1 + $0x338] sm:$0xff]
  %v132 = vld [vmem:[%s1 + $0x340] sm:$0xff]
  %v133 = vld [vmem:[%s1 + $0x348] sm:$0xff]
  %v134 = vld [vmem:[%s1 + $0x350] sm:$0xff]
  %v135 = vld [vmem:[%s1 + $0x358] sm:$0xff]
  %v136 = vld [vmem:[%s1 + $0x360] sm:$0xff]
  %v137 = vld [vmem:[%s1 + $0x368] sm:$0xff]
  %v138 = vld [vmem:[%s1 + $0x370] sm:$0xff]
  %v139 = vld [vmem:[%s1 + $0x378] sm:$0xff]
  %v140 = vld [vmem:[%s1 + $0x380] sm:$0xff]
  %v141 = vld [vmem:[%s1 + $0x388] sm:$0xff]
  %v142 = vld [vmem:[%s1 + $0x390] sm:$0xff]
  %v143 = vld [vmem:[%s1 + $0x398] sm:$0xff]
  %v144 = vld [vmem:[%s1 + $0x3a0] sm:$0xff]
  %v145 = vld [vmem:[%s1 + $0x3a8] sm:$0xff]
  %v146 = vld [vmem:[%s1 + $0x3b0] sm:$0xff]
  %v147 = vld [vmem:[%s1 + $0x3b8] sm:$0xff]
  %v148 = vld [vmem:[%s1 + $0x3c0] sm:$0xff]
  %v149 = vld [vmem:[%s1 + $0x3c8] sm:$0xff]
  %v150 = vld [vmem:[%s1 + $0x3d0] sm:$0xff]
  %v151 = vld [vmem:[%s1 + $0x3d8] sm:$0xff]
  %v152 = vld [vmem:[%s1 + $0x3e0] sm:$0xff]
  %v153 = vld [vmem:[%s1 + $0x3e8] sm:$0xff]
  %v154 = vld [vmem:[%s1 + $0x3f0] sm:$0xff]
  %v155 = vld [vmem:[%s1 + $0x3f8] sm:$0xff]
  %v163 = vunpack.c.l.b16 %v21
  %v164 = vunpack.c.l.b16 %v22
  %v165 = vunpack.c.l.b16 %v23
  %v166 = vunpack.c.l.b16 %v24
  %v167 = vunpack.c.l.b16 %v25
  %v168 = vunpack.c.l.b16 %v26
  %v169 = vunpack.c.l.b16 %v27
  %v170 = vpack.c.b16 %v164, %v163
  %v171 = vpack.c.b16 %v166, %v165
  %v172 = vpack.c.b16 %v168, %v167
  %v173 = vpack.c.b16 %v169, %v169
  %v306 = vunpack.c.l.b16 %v28
  %v307 = vunpack.c.h.b16 %v28
  %v308 = vunpack.c.l.b16 %v29
  %v309 = vunpack.c.h.b16 %v29
  %v310 = vunpack.c.l.b16 %v30
  %v311 = vunpack.c.h.b16 %v30
  %v312 = vunpack.c.l.b16 %v31
  %v313 = vunpack.c.h.b16 %v31
  %v314 = vunpack.c.l.b16 %v32
  %v315 = vunpack.c.h.b16 %v32
  %v316 = vunpack.c.l.b16 %v33
  %v317 = vunpack.c.h.b16 %v33
  %v318 = vunpack.c.l.b16 %v34
  %v319 = vunpack.c.h.b16 %v34
  %v320 = vunpack.c.l.b16 %v35
  %v321 = vunpack.c.h.b16 %v35
  %v322 = vunpack.c.l.b16 %v36
  %v323 = vunpack.c.h.b16 %v36
  %v324 = vunpack.c.l.b16 %v37
  %v325 = vunpack.c.h.b16 %v37
  %v326 = vunpack.c.l.b16 %v38
  %v327 = vunpack.c.h.b16 %v38
  %v328 = vunpack.c.l.b16 %v39
  %v329 = vunpack.c.h.b16 %v39
  %v330 = vunpack.c.l.b16 %v40
  %v331 = vunpack.c.h.b16 %v40
  %v332 = vunpack.c.l.b16 %v41
  %v333 = vunpack.c.h.b16 %v41
  %v334 = vunpack.c.l.b16 %v42
  %v335 = vunpack.c.h.b16 %v42
  %v336 = vunpack.c.l.b16 %v43
  %v337 = vunpack.c.h.b16 %v43
  %v338 = vunpack.c.l.b16 %v44
  %v339 = vunpack.c.h.b16 %v44
  %v340 = vunpack.c.l.b16 %v45
  %v341 = vunpack.c.h.b16 %v45
  %v342 = vunpack.c.l.b16 %v46
  %v343 = vunpack.c.h.b16 %v46
  %v344 = vunpack.c.l.b16 %v47
  %v345 = vunpack.c.h.b16 %v47
  %v346 = vunpack.c.l.b16 %v48
  %v347 = vunpack.c.h.b16 %v48
  %v348 = vunpack.c.l.b16 %v49
  %v349 = vunpack.c.h.b16 %v49
  %v350 = vunpack.c.l.b16 %v50
  %v351 = vunpack.c.h.b16 %v50
  %v352 = vunpack.c.l.b16 %v51
  %v353 = vunpack.c.h.b16 %v51
  %v354 = vunpack.c.l.b16 %v52
  %v355 = vunpack.c.h.b16 %v52
  %v356 = vunpack.c.l.b16 %v53
  %v357 = vunpack.c.h.b16 %v53
  %v358 = vunpack.c.l.b16 %v54
  %v359 = vunpack.c.h.b16 %v54
  %v360 = vunpack.c.l.b16 %v55
  %v361 = vunpack.c.h.b16 %v55
  %v362 = vunpack.c.l.b16 %v56
  %v363 = vunpack.c.h.b16 %v56
  %v364 = vunpack.c.l.b16 %v57
  %v365 = vunpack.c.h.b16 %v57
  %v366 = vunpack.c.l.b16 %v58
  %v367 = vunpack.c.h.b16 %v58
  %v368 = vunpack.c.l.b16 %v59
  %v369 = vunpack.c.h.b16 %v59
  %v370 = vunpack.c.l.b16 %v60
  %v371 = vunpack.c.h.b16 %v60
  %v372 = vunpack.c.l.b16 %v61
  %v373 = vunpack.c.h.b16 %v61
  %v374 = vunpack.c.l.b16 %v62
  %v375 = vunpack.c.h.b16 %v62
  %v376 = vunpack.c.l.b16 %v63
  %v377 = vunpack.c.h.b16 %v63
  %v378 = vunpack.c.l.b16 %v64
  %v379 = vunpack.c.h.b16 %v64
  %v380 = vunpack.c.l.b16 %v65
  %v381 = vunpack.c.h.b16 %v65
  %v382 = vunpack.c.l.b16 %v66
  %v383 = vunpack.c.h.b16 %v66
  %v384 = vunpack.c.l.b16 %v67
  %v385 = vunpack.c.h.b16 %v67
  %v386 = vunpack.c.l.b16 %v68
  %v387 = vunpack.c.h.b16 %v68
  %v388 = vunpack.c.l.b16 %v69
  %v389 = vunpack.c.h.b16 %v69
  %v390 = vunpack.c.l.b16 %v70
  %v391 = vunpack.c.h.b16 %v70
  %v392 = vunpack.c.l.b16 %v71
  %v393 = vunpack.c.h.b16 %v71
  %v394 = vunpack.c.l.b16 %v72
  %v395 = vunpack.c.h.b16 %v72
  %v396 = vunpack.c.l.b16 %v73
  %v397 = vunpack.c.h.b16 %v73
  %v398 = vunpack.c.l.b16 %v74
  %v399 = vunpack.c.h.b16 %v74
  %v400 = vunpack.c.l.b16 %v75
  %v401 = vunpack.c.h.b16 %v75
  %v402 = vunpack.c.l.b16 %v76
  %v403 = vunpack.c.h.b16 %v76
  %v404 = vunpack.c.l.b16 %v77
  %v405 = vunpack.c.h.b16 %v77
  %v406 = vunpack.c.l.b16 %v78
  %v407 = vunpack.c.h.b16 %v78
  %v408 = vunpack.c.l.b16 %v79
  %v409 = vunpack.c.h.b16 %v79
  %v410 = vunpack.c.l.b16 %v80
  %v411 = vunpack.c.h.b16 %v80
  %v412 = vunpack.c.l.b16 %v81
  %v413 = vunpack.c.h.b16 %v81
  %v414 = vunpack.c.l.b16 %v82
  %v415 = vunpack.c.h.b16 %v82
  %v416 = vunpack.c.l.b16 %v83
  %v417 = vunpack.c.h.b16 %v83
  %v418 = vunpack.c.l.b16 %v84
  %v419 = vunpack.c.h.b16 %v84
  %v420 = vunpack.c.l.b16 %v85
  %v421 = vunpack.c.h.b16 %v85
  %v422 = vunpack.c.l.b16 %v86
  %v423 = vunpack.c.h.b16 %v86
  %v424 = vunpack.c.l.b16 %v87
  %v425 = vunpack.c.h.b16 %v87
  %v426 = vunpack.c.l.b16 %v88
  %v427 = vunpack.c.h.b16 %v88
  %v428 = vunpack.c.l.b16 %v89
  %v429 = vunpack.c.h.b16 %v89
  %v430 = vunpack.c.l.b16 %v90
  %v431 = vunpack.c.h.b16 %v90
  %v432 = vunpack.c.l.b16 %v91
  %v433 = vunpack.c.h.b16 %v91
  %v434 = vunpack.c.l.b16 %v92
  %v435 = vunpack.c.h.b16 %v92
  %v436 = vunpack.c.l.b16 %v93
  %v437 = vunpack.c.h.b16 %v93
  %v438 = vunpack.c.l.b16 %v94
  %v439 = vunpack.c.h.b16 %v94
  %v440 = vunpack.c.l.b16 %v95
  %v441 = vunpack.c.h.b16 %v95
  %v442 = vunpack.c.l.b16 %v96
  %v443 = vunpack.c.h.b16 %v96
  %v444 = vunpack.c.l.b16 %v97
  %v445 = vunpack.c.h.b16 %v97
  %v446 = vunpack.c.l.b16 %v98
  %v447 = vunpack.c.h.b16 %v98
  %v448 = vunpack.c.l.b16 %v99
  %v449 = vunpack.c.h.b16 %v99
  %v450 = vunpack.c.l.b16 %v100
  %v451 = vunpack.c.h.b16 %v100
  %v452 = vunpack.c.l.b16 %v101
  %v453 = vunpack.c.h.b16 %v101
  %v454 = vunpack.c.l.b16 %v102
  %v455 = vunpack.c.h.b16 %v102
  %v456 = vunpack.c.l.b16 %v103
  %v457 = vunpack.c.h.b16 %v103
  %v458 = vunpack.c.l.b16 %v104
  %v459 = vunpack.c.h.b16 %v104
  %v460 = vunpack.c.l.b16 %v105
  %v461 = vunpack.c.h.b16 %v105
  %v462 = vunpack.c.l.b16 %v106
  %v463 = vunpack.c.h.b16 %v106
  %v464 = vunpack.c.l.b16 %v107
  %v465 = vunpack.c.h.b16 %v107
  %v466 = vunpack.c.l.b16 %v108
  %v467 = vunpack.c.h.b16 %v108
  %v468 = vunpack.c.l.b16 %v109
  %v469 = vunpack.c.h.b16 %v109
  %v470 = vunpack.c.l.b16 %v110
  %v471 = vunpack.c.h.b16 %v110
  %v472 = vunpack.c.l.b16 %v111
  %v473 = vunpack.c.h.b16 %v111
  %v474 = vunpack.c.l.b16 %v112
  %v475 = vunpack.c.h.b16 %v112
  %v476 = vunpack.c.l.b16 %v113
  %v477 = vunpack.c.h.b16 %v113
  %v478 = vunpack.c.l.b16 %v114
  %v479 = vunpack.c.h.b16 %v114
  %v480 = vunpack.c.l.b16 %v115
  %v481 = vunpack.c.h.b16 %v115
  %v482 = vunpack.c.l.b16 %v116
  %v483 = vunpack.c.h.b16 %v116
  %v484 = vunpack.c.l.b16 %v117
  %v485 = vunpack.c.h.b16 %v117
  %v486 = vunpack.c.l.b16 %v118
  %v487 = vunpack.c.h.b16 %v118
  %v488 = vunpack.c.l.b16 %v119
  %v489 = vunpack.c.h.b16 %v119
  %v490 = vunpack.c.l.b16 %v120
  %v491 = vunpack.c.h.b16 %v120
  %v492 = vunpack.c.l.b16 %v121
  %v493 = vunpack.c.h.b16 %v121
  %v494 = vunpack.c.l.b16 %v122
  %v495 = vunpack.c.h.b16 %v122
  %v496 = vunpack.c.l.b16 %v123
  %v497 = vunpack.c.h.b16 %v123
  %v498 = vunpack.c.l.b16 %v124
  %v499 = vunpack.c.h.b16 %v124
  %v500 = vunpack.c.l.b16 %v125
  %v501 = vunpack.c.h.b16 %v125
  %v502 = vunpack.c.l.b16 %v126
  %v503 = vunpack.c.h.b16 %v126
  %v504 = vunpack.c.l.b16 %v127
  %v505 = vunpack.c.h.b16 %v127
  %v506 = vunpack.c.l.b16 %v128
  %v507 = vunpack.c.h.b16 %v128
  %v508 = vunpack.c.l.b16 %v129
  %v509 = vunpack.c.h.b16 %v129
  %v510 = vunpack.c.l.b16 %v130
  %v511 = vunpack.c.h.b16 %v130
  %v512 = vunpack.c.l.b16 %v131
  %v513 = vunpack.c.h.b16 %v131
  %v514 = vunpack.c.l.b16 %v132
  %v515 = vunpack.c.h.b16 %v132
  %v516 = vunpack.c.l.b16 %v133
  %v517 = vunpack.c.h.b16 %v133
  %v518 = vunpack.c.l.b16 %v134
  %v519 = vunpack.c.h.b16 %v134
  %v520 = vunpack.c.l.b16 %v135
  %v521 = vunpack.c.h.b16 %v135
  %v522 = vunpack.c.l.b16 %v136
  %v523 = vunpack.c.h.b16 %v136
  %v524 = vunpack.c.l.b16 %v137
  %v525 = vunpack.c.h.b16 %v137
  %v526 = vunpack.c.l.b16 %v138
  %v527 = vunpack.c.h.b16 %v138
  %v528 = vunpack.c.l.b16 %v139
  %v529 = vunpack.c.h.b16 %v139
  %v530 = vunpack.c.l.b16 %v140
  %v531 = vunpack.c.h.b16 %v140
  %v532 = vunpack.c.l.b16 %v141
  %v533 = vunpack.c.h.b16 %v141
  %v534 = vunpack.c.l.b16 %v142
  %v535 = vunpack.c.h.b16 %v142
  %v536 = vunpack.c.l.b16 %v143
  %v537 = vunpack.c.h.b16 %v143
  %v538 = vunpack.c.l.b16 %v144
  %v539 = vunpack.c.h.b16 %v144
  %v540 = vunpack.c.l.b16 %v145
  %v541 = vunpack.c.h.b16 %v145
  %v542 = vunpack.c.l.b16 %v146
  %v543 = vunpack.c.h.b16 %v146
  %v544 = vunpack.c.l.b16 %v147
  %v545 = vunpack.c.h.b16 %v147
  %v546 = vunpack.c.l.b16 %v148
  %v547 = vunpack.c.h.b16 %v148
  %v548 = vunpack.c.l.b16 %v149
  %v549 = vunpack.c.h.b16 %v149
  %v550 = vunpack.c.l.b16 %v150
  %v551 = vunpack.c.h.b16 %v150
  %v552 = vunpack.c.l.b16 %v151
  %v553 = vunpack.c.h.b16 %v151
  %v554 = vunpack.c.l.b16 %v152
  %v555 = vunpack.c.h.b16 %v152
  %v556 = vunpack.c.l.b16 %v153
  %v557 = vunpack.c.h.b16 %v153
  %v558 = vunpack.c.l.b16 %v154
  %v559 = vunpack.c.h.b16 %v154
  %v560 = vunpack.c.l.b16 %v155
  %v561 = vunpack.c.h.b16 %v155
  %v562 = vpack.c.b16 %v322, %v306
  %v563 = vpack.c.b16 %v323, %v307
  %v564 = vpack.c.b16 %v324, %v308
  %v565 = vpack.c.b16 %v325, %v309
  %v566 = vpack.c.b16 %v326, %v310
  %v567 = vpack.c.b16 %v327, %v311
  %v568 = vpack.c.b16 %v328, %v312
  %v569 = vpack.c.b16 %v329, %v313
  %v570 = vpack.c.b16 %v330, %v314
  %v571 = vpack.c.b16 %v331, %v315
  %v572 = vpack.c.b16 %v332, %v316
  %v573 = vpack.c.b16 %v333, %v317
  %v574 = vpack.c.b16 %v334, %v318
  %v575 = vpack.c.b16 %v335, %v319
  %v576 = vpack.c.b16 %v336, %v320
  %v577 = vpack.c.b16 %v337, %v321
  %v578 = vpack.c.b16 %v354, %v338
  %v579 = vpack.c.b16 %v355, %v339
  %v580 = vpack.c.b16 %v356, %v340
  %v581 = vpack.c.b16 %v357, %v341
  %v582 = vpack.c.b16 %v358, %v342
  %v583 = vpack.c.b16 %v359, %v343
  %v584 = vpack.c.b16 %v360, %v344
  %v585 = vpack.c.b16 %v361, %v345
  %v586 = vpack.c.b16 %v362, %v346
  %v587 = vpack.c.b16 %v363, %v347
  %v588 = vpack.c.b16 %v364, %v348
  %v589 = vpack.c.b16 %v365, %v349
  %v590 = vpack.c.b16 %v366, %v350
  %v591 = vpack.c.b16 %v367, %v351
  %v592 = vpack.c.b16 %v368, %v352
  %v593 = vpack.c.b16 %v369, %v353
  %v594 = vpack.c.b16 %v386, %v370
  %v595 = vpack.c.b16 %v387, %v371
  %v596 = vpack.c.b16 %v388, %v372
  %v597 = vpack.c.b16 %v389, %v373
  %v598 = vpack.c.b16 %v390, %v374
  %v599 = vpack.c.b16 %v391, %v375
  %v600 = vpack.c.b16 %v392, %v376
  %v601 = vpack.c.b16 %v393, %v377
  %v602 = vpack.c.b16 %v394, %v378
  %v603 = vpack.c.b16 %v395, %v379
  %v604 = vpack.c.b16 %v396, %v380
  %v605 = vpack.c.b16 %v397, %v381
  %v606 = vpack.c.b16 %v398, %v382
  %v607 = vpack.c.b16 %v399, %v383
  %v608 = vpack.c.b16 %v400, %v384
  %v609 = vpack.c.b16 %v401, %v385
  %v610 = vpack.c.b16 %v418, %v402
  %v611 = vpack.c.b16 %v419, %v403
  %v612 = vpack.c.b16 %v420, %v404
  %v613 = vpack.c.b16 %v421, %v405
  %v614 = vpack.c.b16 %v422, %v406
  %v615 = vpack.c.b16 %v423, %v407
  %v616 = vpack.c.b16 %v424, %v408
  %v617 = vpack.c.b16 %v425, %v409
  %v618 = vpack.c.b16 %v426, %v410
  %v619 = vpack.c.b16 %v427, %v411
  %v620 = vpack.c.b16 %v428, %v412
  %v621 = vpack.c.b16 %v429, %v413
  %v622 = vpack.c.b16 %v430, %v414
  %v623 = vpack.c.b16 %v431, %v415
  %v624 = vpack.c.b16 %v432, %v416
  %v625 = vpack.c.b16 %v433, %v417
  %v626 = vpack.c.b16 %v450, %v434
  %v627 = vpack.c.b16 %v451, %v435
  %v628 = vpack.c.b16 %v452, %v436
  %v629 = vpack.c.b16 %v453, %v437
  %v630 = vpack.c.b16 %v454, %v438
  %v631 = vpack.c.b16 %v455, %v439
  %v632 = vpack.c.b16 %v456, %v440
  %v633 = vpack.c.b16 %v457, %v441
  %v634 = vpack.c.b16 %v458, %v442
  %v635 = vpack.c.b16 %v459, %v443
  %v636 = vpack.c.b16 %v460, %v444
  %v637 = vpack.c.b16 %v461, %v445
  %v638 = vpack.c.b16 %v462, %v446
  %v639 = vpack.c.b16 %v463, %v447
  %v640 = vpack.c.b16 %v464, %v448
  %v641 = vpack.c.b16 %v465, %v449
  %v642 = vpack.c.b16 %v482, %v466
  %v643 = vpack.c.b16 %v483, %v467
  %v644 = vpack.c.b16 %v484, %v468
  %v645 = vpack.c.b16 %v485, %v469
  %v646 = vpack.c.b16 %v486, %v470
  %v647 = vpack.c.b16 %v487, %v471
  %v648 = vpack.c.b16 %v488, %v472
  %v649 = vpack.c.b16 %v489, %v473
  %v650 = vpack.c.b16 %v490, %v474
  %v651 = vpack.c.b16 %v491, %v475
  %v652 = vpack.c.b16 %v492, %v476
  %v653 = vpack.c.b16 %v493, %v477
  %v654 = vpack.c.b16 %v494, %v478
  %v655 = vpack.c.b16 %v495, %v479
  %v656 = vpack.c.b16 %v496, %v480
  %v657 = vpack.c.b16 %v497, %v481
  %v658 = vpack.c.b16 %v514, %v498
  %v659 = vpack.c.b16 %v515, %v499
  %v660 = vpack.c.b16 %v516, %v500
  %v661 = vpack.c.b16 %v517, %v501
  %v662 = vpack.c.b16 %v518, %v502
  %v663 = vpack.c.b16 %v519, %v503
  %v664 = vpack.c.b16 %v520, %v504
  %v665 = vpack.c.b16 %v521, %v505
  %v666 = vpack.c.b16 %v522, %v506
  %v667 = vpack.c.b16 %v523, %v507
  %v668 = vpack.c.b16 %v524, %v508
  %v669 = vpack.c.b16 %v525, %v509
  %v670 = vpack.c.b16 %v526, %v510
  %v671 = vpack.c.b16 %v527, %v511
  %v672 = vpack.c.b16 %v528, %v512
  %v673 = vpack.c.b16 %v529, %v513
  %v674 = vpack.c.b16 %v546, %v530
  %v675 = vpack.c.b16 %v547, %v531
  %v676 = vpack.c.b16 %v548, %v532
  %v677 = vpack.c.b16 %v549, %v533
  %v678 = vpack.c.b16 %v550, %v534
  %v679 = vpack.c.b16 %v551, %v535
  %v680 = vpack.c.b16 %v552, %v536
  %v681 = vpack.c.b16 %v553, %v537
  %v682 = vpack.c.b16 %v554, %v538
  %v683 = vpack.c.b16 %v555, %v539
  %v684 = vpack.c.b16 %v556, %v540
  %v685 = vpack.c.b16 %v557, %v541
  %v686 = vpack.c.b16 %v558, %v542
  %v687 = vpack.c.b16 %v559, %v543
  %v688 = vpack.c.b16 %v560, %v544
  %v689 = vpack.c.b16 %v561, %v545
  %818 = vmatprep.subr.bf16.mxu0 %v675
  %819 = vmatpush1.bf16.msra.mxu0 %v674
  %820 = vmatprep.subr.bf16.mxu0 %v659
  %821 = vmatpush1.bf16.msra.mxu0 %v658
  %822 = vmatprep.subr.bf16.mxu0 %v643
  %823 = vmatpush1.bf16.msra.mxu0 %v642
  %824 = vmatprep.subr.bf16.mxu0 %v627
  %825 = vmatpush1.bf16.msra.mxu0 %v626
  %826 = vmatprep.subr.bf16.mxu0 %v611
  %827 = vmatpush1.bf16.msra.mxu0 %v610
  %828 = vmatprep.subr.bf16.mxu0 %v595
  %829 = vmatpush1.bf16.msra.mxu0 %v594
  %830 = vmatprep.subr.bf16.mxu0 %v579
  %831 = vmatpush1.bf16.msra.mxu0 %v578
  %832 = vmatprep.subr.bf16.mxu0 %v563
  %833 = vmatpush1.bf16.msra.mxu0 %v562
  %834 = vmatprep.subr.bf16.mxu0 0
  %835 = vmatpush2.bf16.msra.mxu0 0
  %836 = vmatprep.subr.bf16.mxu0 0
  %837 = vmatpush2.bf16.msra.mxu0 0
  %838 = vmatprep.subr.bf16.mxu0 0
  %839 = vmatpush2.bf16.msra.mxu0 0
  %840 = vmatprep.subr.bf16.mxu0 0
  %841 = vmatpush2.bf16.msra.mxu0 0
  %842 = vmatprep.subr.bf16.mxu0 0
  %843 = vmatpush2.bf16.msra.mxu0 0
  %844 = vmatprep.subr.bf16.mxu0 0
  %845 = vmatpush2.bf16.msra.mxu0 0
  %846 = vmatprep.subr.bf16.mxu0 0
  %847 = vmatpush2.bf16.msra.mxu0 0
  %848 = vmatprep.subr.bf16.mxu0 0
  %849 = vmatpush2.bf16.msra.mxu0 0
  %850 = vmatprep.mubr.bf16.mxu0 0
  %851 = vmatmul.mubr.bf16.gmra.mxu0 %v170
  %v852 = vpop.f32.mrf.mxu0
  %v853 = vadd.f32 0.0, %v852
  %v854 = vpop.f32.mrf.mxu0
  %v855 = vadd.f32 0.0, %v854
  %v856 = vpop.f32.mrf.mxu0
  %v857 = vadd.f32 0.0, %v856
  %v858 = vpop.f32.mrf.mxu0
  %v859 = vadd.f32 0.0, %v858
  %860 = vmatprep.mubr.bf16.mxu0 0
  %861 = vmatmul.mubr.bf16.gmra.mxu0 %v171
  %v862 = vpop.f32.mrf.mxu0
  %v863 = vadd.f32 0.0, %v862
  %v864 = vpop.f32.mrf.mxu0
  %v865 = vadd.f32 0.0, %v864
  %v866 = vpop.f32.mrf.mxu0
  %v867 = vadd.f32 0.0, %v866
  %v868 = vpop.f32.mrf.mxu0
  %v869 = vadd.f32 0.0, %v868
  %870 = vmatprep.mubr.bf16.mxu0 0
  %871 = vmatmul.mubr.bf16.gmra.mxu0 %v172
  %v872 = vpop.f32.mrf.mxu0
  %v873 = vadd.f32 0.0, %v872
  %v874 = vpop.f32.mrf.mxu0
  %v875 = vadd.f32 0.0, %v874
  %v876 = vpop.f32.mrf.mxu0
  %v877 = vadd.f32 0.0, %v876
  %v878 = vpop.f32.mrf.mxu0
  %v879 = vadd.f32 0.0, %v878
  %880 = vmatprep.mubr.bf16.mxu0 0
  %881 = vmatmul.mubr.bf16.gmra.mxu0 %v173
  %v882 = vpop.f32.mrf.mxu0
  %v883 = vadd.f32 0.0, %v882
  %v884 = vpop.f32.mrf.mxu0
  %v885 = vadd.f32 0.0, %v884
  %v886 = vpop.f32.mrf.mxu0
  %v887 = vpop.f32.mrf.mxu0
  %888 = vdwg.mxu0
  %889 = vmatprep.subr.bf16.mxu0 %v677
  %890 = vmatpush1.bf16.msra.mxu0 %v676
  %891 = vmatprep.subr.bf16.mxu0 %v661
  %892 = vmatpush1.bf16.msra.mxu0 %v660
  %893 = vmatprep.subr.bf16.mxu0 %v645
  %894 = vmatpush1.bf16.msra.mxu0 %v644
  %895 = vmatprep.subr.bf16.mxu0 %v629
  %896 = vmatpush1.bf16.msra.mxu0 %v628
  %897 = vmatprep.subr.bf16.mxu0 %v613
  %898 = vmatpush1.bf16.msra.mxu0 %v612
  %899 = vmatprep.subr.bf16.mxu0 %v597
  %900 = vmatpush1.bf16.msra.mxu0 %v596
  %901 = vmatprep.subr.bf16.mxu0 %v581
  %902 = vmatpush1.bf16.msra.mxu0 %v580
  %903 = vmatprep.subr.bf16.mxu0 %v565
  %904 = vmatpush1.bf16.msra.mxu0 %v564
  %905 = vmatprep.subr.bf16.mxu0 0
  %906 = vmatpush2.bf16.msra.mxu0 0
  %907 = vmatprep.subr.bf16.mxu0 0
  %908 = vmatpush2.bf16.msra.mxu0 0
  %909 = vmatprep.subr.bf16.mxu0 0
  %910 = vmatpush2.bf16.msra.mxu0 0
  %911 = vmatprep.subr.bf16.mxu0 0
  %912 = vmatpush2.bf16.msra.mxu0 0
  %913 = vmatprep.subr.bf16.mxu0 0
  %914 = vmatpush2.bf16.msra.mxu0 0
  %915 = vmatprep.subr.bf16.mxu0 0
  %916 = vmatpush2.bf16.msra.mxu0 0
  %917 = vmatprep.subr.bf16.mxu0 0
  %918 = vmatpush2.bf16.msra.mxu0 0
  %919 = vmatprep.subr.bf16.mxu0 0
  %920 = vmatpush2.bf16.msra.mxu0 0
  %921 = vmatprep.mubr.bf16.mxu0 0
  %922 = vmatmul.mubr.bf16.gmra.mxu0 %v170
  %v923 = vpop.f32.mrf.mxu0
  %v924 = vadd.f32 0.0, %v923
  %v925 = vpop.f32.mrf.mxu0
  %v926 = vadd.f32 0.0, %v925
  %v927 = vpop.f32.mrf.mxu0
  %v928 = vadd.f32 0.0, %v927
  %v929 = vpop.f32.mrf.mxu0
  %v930 = vadd.f32 0.0, %v929
  %931 = vmatprep.mubr.bf16.mxu0 0
  %932 = vmatmul.mubr.bf16.gmra.mxu0 %v171
  %v933 = vpop.f32.mrf.mxu0
  %v934 = vadd.f32 0.0, %v933
  %v935 = vpop.f32.mrf.mxu0
  %v936 = vadd.f32 0.0, %v935
  %v937 = vpop.f32.mrf.mxu0
  %v938 = vadd.f32 0.0, %v937
  %v939 = vpop.f32.mrf.mxu0
  %v940 = vadd.f32 0.0, %v939
  %941 = vmatprep.mubr.bf16.mxu0 0
  %942 = vmatmul.mubr.bf16.gmra.mxu0 %v172
  %v943 = vpop.f32.mrf.mxu0
  %v944 = vadd.f32 0.0, %v943
  %v945 = vpop.f32.mrf.mxu0
  %v946 = vadd.f32 0.0, %v945
  %v947 = vpop.f32.mrf.mxu0
  %v948 = vadd.f32 0.0, %v947
  %v949 = vpop.f32.mrf.mxu0
  %v950 = vadd.f32 0.0, %v949
  %951 = vmatprep.mubr.bf16.mxu0 0
  %952 = vmatmul.mubr.bf16.gmra.mxu0 %v173
  %v953 = vpop.f32.mrf.mxu0
  %v954 = vadd.f32 0.0, %v953
  %v955 = vpop.f32.mrf.mxu0
  %v956 = vadd.f32 0.0, %v955
  %v957 = vpop.f32.mrf.mxu0
  %v958 = vpop.f32.mrf.mxu0
  %959 = vdwg.mxu0
  %960 = vmatprep.subr.bf16.mxu0 %v679
  %961 = vmatpush1.bf16.msra.mxu0 %v678
  %962 = vmatprep.subr.bf16.mxu0 %v663
  %963 = vmatpush1.bf16.msra.mxu0 %v662
  %964 = vmatprep.subr.bf16.mxu0 %v647
  %965 = vmatpush1.bf16.msra.mxu0 %v646
  %966 = vmatprep.subr.bf16.mxu0 %v631
  %967 = vmatpush1.bf16.msra.mxu0 %v630
  %968 = vmatprep.subr.bf16.mxu0 %v615
  %969 = vmatpush1.bf16.msra.mxu0 %v614
  %970 = vmatprep.subr.bf16.mxu0 %v599
  %971 = vmatpush1.bf16.msra.mxu0 %v598
  %972 = vmatprep.subr.bf16.mxu0 %v583
  %973 = vmatpush1.bf16.msra.mxu0 %v582
  %974 = vmatprep.subr.bf16.mxu0 %v567
  %975 = vmatpush1.bf16.msra.mxu0 %v566
  %976 = vmatprep.subr.bf16.mxu0 0
  %977 = vmatpush2.bf16.msra.mxu0 0
  %978 = vmatprep.subr.bf16.mxu0 0
  %979 = vmatpush2.bf16.msra.mxu0 0
  %980 = vmatprep.subr.bf16.mxu0 0
  %981 = vmatpush2.bf16.msra.mxu0 0
  %982 = vmatprep.subr.bf16.mxu0 0
  %983 = vmatpush2.bf16.msra.mxu0 0
  %984 = vmatprep.subr.bf16.mxu0 0
  %985 = vmatpush2.bf16.msra.mxu0 0
  %986 = vmatprep.subr.bf16.mxu0 0
  %987 = vmatpush2.bf16.msra.mxu0 0
  %988 = vmatprep.subr.bf16.mxu0 0
  %989 = vmatpush2.bf16.msra.mxu0 0
  %990 = vmatprep.subr.bf16.mxu0 0
  %991 = vmatpush2.bf16.msra.mxu0 0
  %992 = vmatprep.mubr.bf16.mxu0 0
  %993 = vmatmul.mubr.bf16.gmra.mxu0 %v170
  %v994 = vpop.f32.mrf.mxu0
  %v995 = vadd.f32 0.0, %v994
  %v996 = vpop.f32.mrf.mxu0
  %v997 = vadd.f32 0.0, %v996
  %v998 = vpop.f32.mrf.mxu0
  %v999 = vadd.f32 0.0, %v998
  %v1000 = vpop.f32.mrf.mxu0
  %v1001 = vadd.f32 0.0, %v1000
  %1002 = vmatprep.mubr.bf16.mxu0 0
  %1003 = vmatmul.mubr.bf16.gmra.mxu0 %v171
  %v1004 = vpop.f32.mrf.mxu0
  %v1005 = vadd.f32 0.0, %v1004
  %v1006 = vpop.f32.mrf.mxu0
  %v1007 = vadd.f32 0.0, %v1006
  %v1008 = vpop.f32.mrf.mxu0
  %v1009 = vadd.f32 0.0, %v1008
  %v1010 = vpop.f32.mrf.mxu0
  %v1011 = vadd.f32 0.0, %v1010
  %1012 = vmatprep.mubr.bf16.mxu0 0
  %1013 = vmatmul.mubr.bf16.gmra.mxu0 %v172
  %v1014 = vpop.f32.mrf.mxu0
  %v1015 = vadd.f32 0.0, %v1014
  %v1016 = vpop.f32.mrf.mxu0
  %v1017 = vadd.f32 0.0, %v1016
  %v1018 = vpop.f32.mrf.mxu0
  %v1019 = vadd.f32 0.0, %v1018
  %v1020 = vpop.f32.mrf.mxu0
  %v1021 = vadd.f32 0.0, %v1020
  %1022 = vmatprep.mubr.bf16.mxu0 0
  %1023 = vmatmul.mubr.bf16.gmra.mxu0 %v173
  %v1024 = vpop.f32.mrf.mxu0
  %v1025 = vadd.f32 0.0, %v1024
  %v1026 = vpop.f32.mrf.mxu0
  %v1027 = vadd.f32 0.0, %v1026
  %v1028 = vpop.f32.mrf.mxu0
  %v1029 = vpop.f32.mrf.mxu0
  %1030 = vdwg.mxu0
  %1031 = vmatprep.subr.bf16.mxu0 %v681
  %1032 = vmatpush1.bf16.msra.mxu0 %v680
  %1033 = vmatprep.subr.bf16.mxu0 %v665
  %1034 = vmatpush1.bf16.msra.mxu0 %v664
  %1035 = vmatprep.subr.bf16.mxu0 %v649
  %1036 = vmatpush1.bf16.msra.mxu0 %v648
  %1037 = vmatprep.subr.bf16.mxu0 %v633
  %1038 = vmatpush1.bf16.msra.mxu0 %v632
  %1039 = vmatprep.subr.bf16.mxu0 %v617
  %1040 = vmatpush1.bf16.msra.mxu0 %v616
  %1041 = vmatprep.subr.bf16.mxu0 %v601
  %1042 = vmatpush1.bf16.msra.mxu0 %v600
  %1043 = vmatprep.subr.bf16.mxu0 %v585
  %1044 = vmatpush1.bf16.msra.mxu0 %v584
  %1045 = vmatprep.subr.bf16.mxu0 %v569
  %1046 = vmatpush1.bf16.msra.mxu0 %v568
  %1047 = vmatprep.subr.bf16.mxu0 0
  %1048 = vmatpush2.bf16.msra.mxu0 0
  %1049 = vmatprep.subr.bf16.mxu0 0
  %1050 = vmatpush2.bf16.msra.mxu0 0
  %1051 = vmatprep.subr.bf16.mxu0 0
  %1052 = vmatpush2.bf16.msra.mxu0 0
  %1053 = vmatprep.subr.bf16.mxu0 0
  %1054 = vmatpush2.bf16.msra.mxu0 0
  %1055 = vmatprep.subr.bf16.mxu0 0
  %1056 = vmatpush2.bf16.msra.mxu0 0
  %1057 = vmatprep.subr.bf16.mxu0 0
  %1058 = vmatpush2.bf16.msra.mxu0 0
  %1059 = vmatprep.subr.bf16.mxu0 0
  %1060 = vmatpush2.bf16.msra.mxu0 0
  %1061 = vmatprep.subr.bf16.mxu0 0
  %1062 = vmatpush2.bf16.msra.mxu0 0
  %1063 = vmatprep.mubr.bf16.mxu0 0
  %1064 = vmatmul.mubr.bf16.gmra.mxu0 %v170
  %v1065 = vpop.f32.mrf.mxu0
  %v1066 = vadd.f32 0.0, %v1065
  %v1067 = vpop.f32.mrf.mxu0
  %v1068 = vadd.f32 0.0, %v1067
  %v1069 = vpop.f32.mrf.mxu0
  %v1070 = vadd.f32 0.0, %v1069
  %v1071 = vpop.f32.mrf.mxu0
  %v1072 = vadd.f32 0.0, %v1071
  %1073 = vmatprep.mubr.bf16.mxu0 0
  %1074 = vmatmul.mubr.bf16.gmra.mxu0 %v171
  %v1075 = vpop.f32.mrf.mxu0
  %v1076 = vadd.f32 0.0, %v1075
  %v1077 = vpop.f32.mrf.mxu0
  %v1078 = vadd.f32 0.0, %v1077
  %v1079 = vpop.f32.mrf.mxu0
  %v1080 = vadd.f32 0.0, %v1079
  %v1081 = vpop.f32.mrf.mxu0
  %v1082 = vadd.f32 0.0, %v1081
  %1083 = vmatprep.mubr.bf16.mxu0 0
  %1084 = vmatmul.mubr.bf16.gmra.mxu0 %v172
  %v1085 = vpop.f32.mrf.mxu0
  %v1086 = vadd.f32 0.0, %v1085
  %v1087 = vpop.f32.mrf.mxu0
  %v1088 = vadd.f32 0.0, %v1087
  %v1089 = vpop.f32.mrf.mxu0
  %v1090 = vadd.f32 0.0, %v1089
  %v1091 = vpop.f32.mrf.mxu0
  %v1092 = vadd.f32 0.0, %v1091
  %1093 = vmatprep.mubr.bf16.mxu0 0
  %1094 = vmatmul.mubr.bf16.gmra.mxu0 %v173
  %v1095 = vpop.f32.mrf.mxu0
  %v1096 = vadd.f32 0.0, %v1095
  %v1097 = vpop.f32.mrf.mxu0
  %v1098 = vadd.f32 0.0, %v1097
  %v1099 = vpop.f32.mrf.mxu0
  %v1100 = vpop.f32.mrf.mxu0
  %1101 = vdwg.mxu0
  %1102 = vmatprep.subr.bf16.mxu0 %v683
  %1103 = vmatpush1.bf16.msra.mxu0 %v682
  %1104 = vmatprep.subr.bf16.mxu0 %v667
  %1105 = vmatpush1.bf16.msra.mxu0 %v666
  %1106 = vmatprep.subr.bf16.mxu0 %v651
  %1107 = vmatpush1.bf16.msra.mxu0 %v650
  %1108 = vmatprep.subr.bf16.mxu0 %v635
  %1109 = vmatpush1.bf16.msra.mxu0 %v634
  %1110 = vmatprep.subr.bf16.mxu0 %v619
  %1111 = vmatpush1.bf16.msra.mxu0 %v618
  %1112 = vmatprep.subr.bf16.mxu0 %v603
  %1113 = vmatpush1.bf16.msra.mxu0 %v602
  %1114 = vmatprep.subr.bf16.mxu0 %v587
  %1115 = vmatpush1.bf16.msra.mxu0 %v586
  %1116 = vmatprep.subr.bf16.mxu0 %v571
  %1117 = vmatpush1.bf16.msra.mxu0 %v570
  %1118 = vmatprep.subr.bf16.mxu0 0
  %1119 = vmatpush2.bf16.msra.mxu0 0
  %1120 = vmatprep.subr.bf16.mxu0 0
  %1121 = vmatpush2.bf16.msra.mxu0 0
  %1122 = vmatprep.subr.bf16.mxu0 0
  %1123 = vmatpush2.bf16.msra.mxu0 0
  %1124 = vmatprep.subr.bf16.mxu0 0
  %1125 = vmatpush2.bf16.msra.mxu0 0
  %1126 = vmatprep.subr.bf16.mxu0 0
  %1127 = vmatpush2.bf16.msra.mxu0 0
  %1128 = vmatprep.subr.bf16.mxu0 0
  %1129 = vmatpush2.bf16.msra.mxu0 0
  %1130 = vmatprep.subr.bf16.mxu0 0
  %1131 = vmatpush2.bf16.msra.mxu0 0
  %1132 = vmatprep.subr.bf16.mxu0 0
  %1133 = vmatpush2.bf16.msra.mxu0 0
  %1134 = vmatprep.mubr.bf16.mxu0 0
  %1135 = vmatmul.mubr.bf16.gmra.mxu0 %v170
  %v1136 = vpop.f32.mrf.mxu0
  %v1137 = vadd.f32 0.0, %v1136
  %v1138 = vpop.f32.mrf.mxu0
  %v1139 = vadd.f32 0.0, %v1138
  %v1140 = vpop.f32.mrf.mxu0
  %v1141 = vadd.f32 0.0, %v1140
  %v1142 = vpop.f32.mrf.mxu0
  %v1143 = vadd.f32 0.0, %v1142
  %1144 = vmatprep.mubr.bf16.mxu0 0
  %1145 = vmatmul.mubr.bf16.gmra.mxu0 %v171
  %v1146 = vpop.f32.mrf.mxu0
  %v1147 = vadd.f32 0.0, %v1146
  %v1148 = vpop.f32.mrf.mxu0
  %v1149 = vadd.f32 0.0, %v1148
  %v1150 = vpop.f32.mrf.mxu0
  %v1151 = vadd.f32 0.0, %v1150
  %v1152 = vpop.f32.mrf.mxu0
  %v1153 = vadd.f32 0.0, %v1152
  %1154 = vmatprep.mubr.bf16.mxu0 0
  %1155 = vmatmul.mubr.bf16.gmra.mxu0 %v172
  %v1156 = vpop.f32.mrf.mxu0
  %v1157 = vadd.f32 0.0, %v1156
  %v1158 = vpop.f32.mrf.mxu0
  %v1159 = vadd.f32 0.0, %v1158
  %v1160 = vpop.f32.mrf.mxu0
  %v1161 = vadd.f32 0.0, %v1160
  %v1162 = vpop.f32.mrf.mxu0
  %v1163 = vadd.f32 0.0, %v1162
  %1164 = vmatprep.mubr.bf16.mxu0 0
  %1165 = vmatmul.mubr.bf16.gmra.mxu0 %v173
  %v1166 = vpop.f32.mrf.mxu0
  %v1167 = vadd.f32 0.0, %v1166
  %v1168 = vpop.f32.mrf.mxu0
  %v1169 = vadd.f32 0.0, %v1168
  %v1170 = vpop.f32.mrf.mxu0
  %v1171 = vpop.f32.mrf.mxu0
  %1172 = vdwg.mxu0
  %1173 = vmatprep.subr.bf16.mxu0 %v685
  %1174 = vmatpush1.bf16.msra.mxu0 %v684
  %1175 = vmatprep.subr.bf16.mxu0 %v669
  %1176 = vmatpush1.bf16.msra.mxu0 %v668
  %1177 = vmatprep.subr.bf16.mxu0 %v653
  %1178 = vmatpush1.bf16.msra.mxu0 %v652
  %1179 = vmatprep.subr.bf16.mxu0 %v637
  %1180 = vmatpush1.bf16.msra.mxu0 %v636
  %1181 = vmatprep.subr.bf16.mxu0 %v621
  %1182 = vmatpush1.bf16.msra.mxu0 %v620
  %1183 = vmatprep.subr.bf16.mxu0 %v605
  %1184 = vmatpush1.bf16.msra.mxu0 %v604
  %1185 = vmatprep.subr.bf16.mxu0 %v589
  %1186 = vmatpush1.bf16.msra.mxu0 %v588
  %1187 = vmatprep.subr.bf16.mxu0 %v573
  %1188 = vmatpush1.bf16.msra.mxu0 %v572
  %1189 = vmatprep.subr.bf16.mxu0 0
  %1190 = vmatpush2.bf16.msra.mxu0 0
  %1191 = vmatprep.subr.bf16.mxu0 0
  %1192 = vmatpush2.bf16.msra.mxu0 0
  %1193 = vmatprep.subr.bf16.mxu0 0
  %1194 = vmatpush2.bf16.msra.mxu0 0
  %1195 = vmatprep.subr.bf16.mxu0 0
  %1196 = vmatpush2.bf16.msra.mxu0 0
  %1197 = vmatprep.subr.bf16.mxu0 0
  %1198 = vmatpush2.bf16.msra.mxu0 0
  %1199 = vmatprep.subr.bf16.mxu0 0
  %1200 = vmatpush2.bf16.msra.mxu0 0
  %1201 = vmatprep.subr.bf16.mxu0 0
  %1202 = vmatpush2.bf16.msra.mxu0 0
  %1203 = vmatprep.subr.bf16.mxu0 0
  %1204 = vmatpush2.bf16.msra.mxu0 0
  %1205 = vmatprep.mubr.bf16.mxu0 0
  %1206 = vmatmul.mubr.bf16.gmra.mxu0 %v170
  %v1207 = vpop.f32.mrf.mxu0
  %v1208 = vadd.f32 0.0, %v1207
  %v1209 = vpop.f32.mrf.mxu0
  %v1210 = vadd.f32 0.0, %v1209
  %v1211 = vpop.f32.mrf.mxu0
  %v1212 = vadd.f32 0.0, %v1211
  %v1213 = vpop.f32.mrf.mxu0
  %v1214 = vadd.f32 0.0, %v1213
  %1215 = vmatprep.mubr.bf16.mxu0 0
  %1216 = vmatmul.mubr.bf16.gmra.mxu0 %v171
  %v1217 = vpop.f32.mrf.mxu0
  %v1218 = vadd.f32 0.0, %v1217
  %v1219 = vpop.f32.mrf.mxu0
  %v1220 = vadd.f32 0.0, %v1219
  %v1221 = vpop.f32.mrf.mxu0
  %v1222 = vadd.f32 0.0, %v1221
  %v1223 = vpop.f32.mrf.mxu0
  %v1224 = vadd.f32 0.0, %v1223
  %1225 = vmatprep.mubr.bf16.mxu0 0
  %1226 = vmatmul.mubr.bf16.gmra.mxu0 %v172
  %v1227 = vpop.f32.mrf.mxu0
  %v1228 = vadd.f32 0.0, %v1227
  %v1229 = vpop.f32.mrf.mxu0
  %v1230 = vadd.f32 0.0, %v1229
  %v1231 = vpop.f32.mrf.mxu0
  %v1232 = vadd.f32 0.0, %v1231
  %v1233 = vpop.f32.mrf.mxu0
  %v1234 = vadd.f32 0.0, %v1233
  %1235 = vmatprep.mubr.bf16.mxu0 0
  %1236 = vmatmul.mubr.bf16.gmra.mxu0 %v173
  %v1237 = vpop.f32.mrf.mxu0
  %v1238 = vadd.f32 0.0, %v1237
  %v1239 = vpop.f32.mrf.mxu0
  %v1240 = vadd.f32 0.0, %v1239
  %v1241 = vpop.f32.mrf.mxu0
  %v1242 = vpop.f32.mrf.mxu0
  %1243 = vdwg.mxu0
  %1244 = vmatprep.subr.bf16.mxu0 %v687
  %1245 = vmatpush1.bf16.msra.mxu0 %v686
  %1246 = vmatprep.subr.bf16.mxu0 %v671
  %1247 = vmatpush1.bf16.msra.mxu0 %v670
  %1248 = vmatprep.subr.bf16.mxu0 %v655
  %1249 = vmatpush1.bf16.msra.mxu0 %v654
  %1250 = vmatprep.subr.bf16.mxu0 %v639
  %1251 = vmatpush1.bf16.msra.mxu0 %v638
  %1252 = vmatprep.subr.bf16.mxu0 %v623
  %1253 = vmatpush1.bf16.msra.mxu0 %v622
  %1254 = vmatprep.subr.bf16.mxu0 %v607
  %1255 = vmatpush1.bf16.msra.mxu0 %v606
  %1256 = vmatprep.subr.bf16.mxu0 %v591
  %1257 = vmatpush1.bf16.msra.mxu0 %v590
  %1258 = vmatprep.subr.bf16.mxu0 %v575
  %1259 = vmatpush1.bf16.msra.mxu0 %v574
  %1260 = vmatprep.subr.bf16.mxu0 0
  %1261 = vmatpush2.bf16.msra.mxu0 0
  %1262 = vmatprep.subr.bf16.mxu0 0
  %1263 = vmatpush2.bf16.msra.mxu0 0
  %1264 = vmatprep.subr.bf16.mxu0 0
  %1265 = vmatpush2.bf16.msra.mxu0 0
  %1266 = vmatprep.subr.bf16.mxu0 0
  %1267 = vmatpush2.bf16.msra.mxu0 0
  %1268 = vmatprep.subr.bf16.mxu0 0
  %1269 = vmatpush2.bf16.msra.mxu0 0
  %1270 = vmatprep.subr.bf16.mxu0 0
  %1271 = vmatpush2.bf16.msra.mxu0 0
  %1272 = vmatprep.subr.bf16.mxu0 0
  %1273 = vmatpush2.bf16.msra.mxu0 0
  %1274 = vmatprep.subr.bf16.mxu0 0
  %1275 = vmatpush2.bf16.msra.mxu0 0
  %1276 = vmatprep.mubr.bf16.mxu0 0
  %1277 = vmatmul.mubr.bf16.gmra.mxu0 %v170
  %v1278 = vpop.f32.mrf.mxu0
  %v1279 = vadd.f32 0.0, %v1278
  %v1280 = vpop.f32.mrf.mxu0
  %v1281 = vadd.f32 0.0, %v1280
  %v1282 = vpop.f32.mrf.mxu0
  %v1283 = vadd.f32 0.0, %v1282
  %v1284 = vpop.f32.mrf.mxu0
  %v1285 = vadd.f32 0.0, %v1284
  %1286 = vmatprep.mubr.bf16.mxu0 0
  %1287 = vmatmul.mubr.bf16.gmra.mxu0 %v171
  %v1288 = vpop.f32.mrf.mxu0
  %v1289 = vadd.f32 0.0, %v1288
  %v1290 = vpop.f32.mrf.mxu0
  %v1291 = vadd.f32 0.0, %v1290
  %v1292 = vpop.f32.mrf.mxu0
  %v1293 = vadd.f32 0.0, %v1292
  %v1294 = vpop.f32.mrf.mxu0
  %v1295 = vadd.f32 0.0, %v1294
  %1296 = vmatprep.mubr.bf16.mxu0 0
  %1297 = vmatmul.mubr.bf16.gmra.mxu0 %v172
  %v1298 = vpop.f32.mrf.mxu0
  %v1299 = vadd.f32 0.0, %v1298
  %v1300 = vpop.f32.mrf.mxu0
  %v1301 = vadd.f32 0.0, %v1300
  %v1302 = vpop.f32.mrf.mxu0
  %v1303 = vadd.f32 0.0, %v1302
  %v1304 = vpop.f32.mrf.mxu0
  %v1305 = vadd.f32 0.0, %v1304
  %1306 = vmatprep.mubr.bf16.mxu0 0
  %1307 = vmatmul.mubr.bf16.gmra.mxu0 %v173
  %v1308 = vpop.f32.mrf.mxu0
  %v1309 = vadd.f32 0.0, %v1308
  %v1310 = vpop.f32.mrf.mxu0
  %v1311 = vadd.f32 0.0, %v1310
  %v1312 = vpop.f32.mrf.mxu0
  %v1313 = vpop.f32.mrf.mxu0
  %1314 = vdwg.mxu0
  %1315 = vmatprep.subr.bf16.mxu0 %v689
  %1316 = vmatpush1.bf16.msra.mxu0 %v688
  %1317 = vmatprep.subr.bf16.mxu0 %v673
  %1318 = vmatpush1.bf16.msra.mxu0 %v672
  %1319 = vmatprep.subr.bf16.mxu0 %v657
  %1320 = vmatpush1.bf16.msra.mxu0 %v656
  %1321 = vmatprep.subr.bf16.mxu0 %v641
  %1322 = vmatpush1.bf16.msra.mxu0 %v640
  %1323 = vmatprep.subr.bf16.mxu0 %v625
  %1324 = vmatpush1.bf16.msra.mxu0 %v624
  %1325 = vmatprep.subr.bf16.mxu0 %v609
  %1326 = vmatpush1.bf16.msra.mxu0 %v608
  %1327 = vmatprep.subr.bf16.mxu0 %v593
  %1328 = vmatpush1.bf16.msra.mxu0 %v592
  %1329 = vmatprep.subr.bf16.mxu0 %v577
  %1330 = vmatpush1.bf16.msra.mxu0 %v576
  %1331 = vmatprep.subr.bf16.mxu0 0
  %1332 = vmatpush2.bf16.msra.mxu0 0
  %1333 = vmatprep.subr.bf16.mxu0 0
  %1334 = vmatpush2.bf16.msra.mxu0 0
  %1335 = vmatprep.subr.bf16.mxu0 0
  %1336 = vmatpush2.bf16.msra.mxu0 0
  %1337 = vmatprep.subr.bf16.mxu0 0
  %1338 = vmatpush2.bf16.msra.mxu0 0
  %1339 = vmatprep.subr.bf16.mxu0 0
  %1340 = vmatpush2.bf16.msra.mxu0 0
  %1341 = vmatprep.subr.bf16.mxu0 0
  %1342 = vmatpush2.bf16.msra.mxu0 0
  %1343 = vmatprep.subr.bf16.mxu0 0
  %1344 = vmatpush2.bf16.msra.mxu0 0
  %1345 = vmatprep.subr.bf16.mxu0 0
  %1346 = vmatpush2.bf16.msra.mxu0 0
  %1347 = vmatprep.mubr.bf16.mxu0 0
  %1348 = vmatmul.mubr.bf16.gmra.mxu0 %v170
  %v1349 = vpop.f32.mrf.mxu0
  %v1350 = vadd.f32 0.0, %v1349
  %v1351 = vpop.f32.mrf.mxu0
  %v1352 = vadd.f32 0.0, %v1351
  %v1353 = vpop.f32.mrf.mxu0
  %v1354 = vadd.f32 0.0, %v1353
  %v1355 = vpop.f32.mrf.mxu0
  %v1356 = vadd.f32 0.0, %v1355
  %1357 = vmatprep.mubr.bf16.mxu0 0
  %1358 = vmatmul.mubr.bf16.gmra.mxu0 %v171
  %v1359 = vpop.f32.mrf.mxu0
  %v1360 = vadd.f32 0.0, %v1359
  %v1361 = vpop.f32.mrf.mxu0
  %v1362 = vadd.f32 0.0, %v1361
  %v1363 = vpop.f32.mrf.mxu0
  %v1364 = vadd.f32 0.0, %v1363
  %v1365 = vpop.f32.mrf.mxu0
  %v1366 = vadd.f32 0.0, %v1365
  %1367 = vmatprep.mubr.bf16.mxu0 0
  %1368 = vmatmul.mubr.bf16.gmra.mxu0 %v172
  %v1369 = vpop.f32.mrf.mxu0
  %v1370 = vadd.f32 0.0, %v1369
  %v1371 = vpop.f32.mrf.mxu0
  %v1372 = vadd.f32 0.0, %v1371
  %v1373 = vpop.f32.mrf.mxu0
  %v1374 = vadd.f32 0.0, %v1373
  %v1375 = vpop.f32.mrf.mxu0
  %v1376 = vadd.f32 0.0, %v1375
  %1377 = vmatprep.mubr.bf16.mxu0 0
  %1378 = vmatmul.mubr.bf16.gmra.mxu0 %v173
  %v1379 = vpop.f32.mrf.mxu0
  %v1380 = vadd.f32 0.0, %v1379
  %v1381 = vpop.f32.mrf.mxu0
  %v1382 = vadd.f32 0.0, %v1381
  %v1383 = vpop.f32.mrf.mxu0
  %v1384 = vpop.f32.mrf.mxu0
  %1385 = vdwg.mxu0
  %v1386 = vmax.f32 %v853, %v995
  %v1387 = vmax.f32 %v855, %v997
  %v1388 = vmax.f32 %v924, %v1066
  %v1389 = vmax.f32 %v926, %v1068
  %v1390 = vmax.f32 %v857, %v999
  %v1391 = vmax.f32 %v859, %v1001
  %v1392 = vmax.f32 %v928, %v1070
  %v1393 = vmax.f32 %v930, %v1072
  %v1394 = vmax.f32 %v863, %v1005
  %v1395 = vmax.f32 %v865, %v1007
  %v1396 = vmax.f32 %v934, %v1076
  %v1397 = vmax.f32 %v936, %v1078
  %v1398 = vmax.f32 %v867, %v1009
  %v1399 = vmax.f32 %v869, %v1011
  %v1400 = vmax.f32 %v938, %v1080
  %v1401 = vmax.f32 %v940, %v1082
  %v1402 = vmax.f32 %v873, %v1015
  %v1403 = vmax.f32 %v875, %v1017
  %v1404 = vmax.f32 %v944, %v1086
  %v1405 = vmax.f32 %v946, %v1088
  %v1406 = vmax.f32 %v877, %v1019
  %v1407 = vmax.f32 %v879, %v1021
  %v1408 = vmax.f32 %v948, %v1090
  %v1409 = vmax.f32 %v950, %v1092
  %v1410 = vmax.f32 %v883, %v1025
  %v1411 = vmax.f32 %v885, %v1027
  %v1412 = vmax.f32 %v954, %v1096
  %v1413 = vmax.f32 %v956, %v1098
  %v1414 = vmax.f32 %v1386, %v1137
  %v1415 = vmax.f32 %v1387, %v1139
  %v1416 = vmax.f32 %v1388, %v1208
  %v1417 = vmax.f32 %v1389, %v1210
  %v1418 = vmax.f32 %v1390, %v1141
  %v1419 = vmax.f32 %v1391, %v1143
  %v1420 = vmax.f32 %v1392, %v1212
  %v1421 = vmax.f32 %v1393, %v1214
  %v1422 = vmax.f32 %v1394, %v1147
  %v1423 = vmax.f32 %v1395, %v1149
  %v1424 = vmax.f32 %v1396, %v1218
  %v1425 = vmax.f32 %v1397, %v1220
  %v1426 = vmax.f32 %v1398, %v1151
  %v1427 = vmax.f32 %v1399, %v1153
  %v1428 = vmax.f32 %v1400, %v1222
  %v1429 = vmax.f32 %v1401, %v1224
  %v1430 = vmax.f32 %v1402, %v1157
  %v1431 = vmax.f32 %v1403, %v1159
  %v1432 = vmax.f32 %v1404, %v1228
  %v1433 = vmax.f32 %v1405, %v1230
  %v1434 = vmax.f32 %v1406, %v1161
  %v1435 = vmax.f32 %v1407, %v1163
  %v1436 = vmax.f32 %v1408, %v1232
  %v1437 = vmax.f32 %v1409, %v1234
  %v1438 = vmax.f32 %v1410, %v1167
  %v1439 = vmax.f32 %v1411, %v1169
  %v1440 = vmax.f32 %v1412, %v1238
  %v1441 = vmax.f32 %v1413, %v1240
  %v1442 = vmax.f32 %v1414, %v1279
  %v1443 = vmax.f32 %v1415, %v1281
  %v1444 = vmax.f32 %v1416, %v1350
  %v1445 = vmax.f32 %v1417, %v1352
  %v1446 = vmax.f32 %v1418, %v1283
  %v1447 = vmax.f32 %v1419, %v1285
  %v1448 = vmax.f32 %v1420, %v1354
  %v1449 = vmax.f32 %v1421, %v1356
  %v1450 = vmax.f32 %v1422, %v1289
  %v1451 = vmax.f32 %v1423, %v1291
  %v1452 = vmax.f32 %v1424, %v1360
  %v1453 = vmax.f32 %v1425, %v1362
  %v1454 = vmax.f32 %v1426, %v1293
  %v1455 = vmax.f32 %v1427, %v1295
  %v1456 = vmax.f32 %v1428, %v1364
  %v1457 = vmax.f32 %v1429, %v1366
  %v1458 = vmax.f32 %v1430, %v1299
  %v1459 = vmax.f32 %v1431, %v1301
  %v1460 = vmax.f32 %v1432, %v1370
  %v1461 = vmax.f32 %v1433, %v1372
  %v1462 = vmax.f32 %v1434, %v1303
  %v1463 = vmax.f32 %v1435, %v1305
  %v1464 = vmax.f32 %v1436, %v1374
  %v1465 = vmax.f32 %v1437, %v1376
  %v1466 = vmax.f32 %v1438, %v1309
  %v1467 = vmax.f32 %v1439, %v1311
  %v1468 = vmax.f32 %v1440, %v1380
  %v1469 = vmax.f32 %v1441, %v1382
  %v1470 = vld [vmem:[%s2] sm:$0xf]
  %v1472 = vlaneseq
  %v1473 = vshrl.u32 %v1472, 7
  %v1474 = vsub.s32 0, %v1473
  %v1475 = vrot.slane %v1470, %v1474
  %v1476 = vlaneseq
  %v1477 = vshrl.u32 %v1476, 7
  %v1478 = vsub.s32 1, %v1477
  %v1479 = vrot.slane %v1470, %v1478
  %v1480 = vlaneseq
  %v1481 = vshrl.u32 %v1480, 7
  %v1482 = vsub.s32 2, %v1481
  %v1483 = vrot.slane %v1470, %v1482
  %v1484 = vlaneseq
  %v1485 = vshrl.u32 %v1484, 7
  %v1486 = vsub.s32 3, %v1485
  %v1487 = vrot.slane %v1470, %v1486
  %v1492 = vadd.f32 %v1442, %v1475
  %v1493 = vadd.f32 %v1443, %v1479
  %v1494 = vadd.f32 %v1444, %v1483
  %v1495 = vadd.f32 %v1445, %v1487
  %v1496 = vadd.f32 %v1446, %v1475
  %v1497 = vadd.f32 %v1447, %v1479
  %v1498 = vadd.f32 %v1448, %v1483
  %v1499 = vadd.f32 %v1449, %v1487
  %v1500 = vadd.f32 %v1450, %v1475
  %v1501 = vadd.f32 %v1451, %v1479
  %v1502 = vadd.f32 %v1452, %v1483
  %v1503 = vadd.f32 %v1453, %v1487
  %v1504 = vadd.f32 %v1454, %v1475
  %v1505 = vadd.f32 %v1455, %v1479
  %v1506 = vadd.f32 %v1456, %v1483
  %v1507 = vadd.f32 %v1457, %v1487
  %v1508 = vadd.f32 %v1458, %v1475
  %v1509 = vadd.f32 %v1459, %v1479
  %v1510 = vadd.f32 %v1460, %v1483
  %v1511 = vadd.f32 %v1461, %v1487
  %v1512 = vadd.f32 %v1462, %v1475
  %v1513 = vadd.f32 %v1463, %v1479
  %v1514 = vadd.f32 %v1464, %v1483
  %v1515 = vadd.f32 %v1465, %v1487
  %v1516 = vadd.f32 %v1466, %v1475
  %v1517 = vadd.f32 %v1467, %v1479
  %v1518 = vadd.f32 %v1468, %v1483
  %v1519 = vadd.f32 %v1469, %v1487
  %v1520 = vmax.f32 %v1492, 0.0
  %v1521 = vmax.f32 %v1493, 0.0
  %v1522 = vmax.f32 %v1494, 0.0
  %v1523 = vmax.f32 %v1495, 0.0
  %v1524 = vmax.f32 %v1496, 0.0
  %v1525 = vmax.f32 %v1497, 0.0
  %v1526 = vmax.f32 %v1498, 0.0
  %v1527 = vmax.f32 %v1499, 0.0
  %v1528 = vmax.f32 %v1500, 0.0
  %v1529 = vmax.f32 %v1501, 0.0
  %v1530 = vmax.f32 %v1502, 0.0
  %v1531 = vmax.f32 %v1503, 0.0
  %v1532 = vmax.f32 %v1504, 0.0
  %v1533 = vmax.f32 %v1505, 0.0
  %v1534 = vmax.f32 %v1506, 0.0
  %v1535 = vmax.f32 %v1507, 0.0
  %v1536 = vmax.f32 %v1508, 0.0
  %v1537 = vmax.f32 %v1509, 0.0
  %v1538 = vmax.f32 %v1510, 0.0
  %v1539 = vmax.f32 %v1511, 0.0
  %v1540 = vmax.f32 %v1512, 0.0
  %v1541 = vmax.f32 %v1513, 0.0
  %v1542 = vmax.f32 %v1514, 0.0
  %v1543 = vmax.f32 %v1515, 0.0
  %v1544 = vmax.f32 %v1516, 0.0
  %v1545 = vmax.f32 %v1517, 0.0
  %v1546 = vmax.f32 %v1518, 0.0
  %v1547 = vmax.f32 %v1519, 0.0
  %v1548 = vpack.c.bf16 %v1524, %v1520
  %v1549 = vpack.c.bf16 %v1525, %v1521
  %v1550 = vpack.c.bf16 %v1526, %v1522
  %v1551 = vpack.c.bf16 %v1527, %v1523
  %v1552 = vpack.c.bf16 %v1532, %v1528
  %v1553 = vpack.c.bf16 %v1533, %v1529
  %v1554 = vpack.c.bf16 %v1534, %v1530
  %v1555 = vpack.c.bf16 %v1535, %v1531
  %v1556 = vpack.c.bf16 %v1540, %v1536
  %v1557 = vpack.c.bf16 %v1541, %v1537
  %v1558 = vpack.c.bf16 %v1542, %v1538
  %v1559 = vpack.c.bf16 %v1543, %v1539
  %v1560 = vpack.c.bf16 %v1544, %v1544
  %v1561 = vpack.c.bf16 %v1545, %v1545
  %v1562 = vpack.c.bf16 %v1546, %v1546
  %v1563 = vpack.c.bf16 %v1547, %v1547
  %v1564 = vld [vmem:[%s3] sm:$0xff]
  %v1565 = vld [vmem:[%s3 + $0x8] sm:$0xff]
  %v1566 = vld [vmem:[%s3 + $0x10] sm:$0xff]
  %v1567 = vld [vmem:[%s3 + $0x18] sm:$0xff]
  %v1568 = vld [vmem:[%s3 + $0x20] sm:$0xff]
  %v1569 = vld [vmem:[%s3 + $0x28] sm:$0xff]
  %v1570 = vld [vmem:[%s3 + $0x30] sm:$0xff]
  %v1571 = vld [vmem:[%s3 + $0x38] sm:$0xff]
  %v1572 = vld [vmem:[%s3 + $0x40] sm:$0xff]
  %v1573 = vld [vmem:[%s3 + $0x48] sm:$0xff]
  %v1574 = vld [vmem:[%s3 + $0x50] sm:$0xff]
  %v1575 = vld [vmem:[%s3 + $0x58] sm:$0xff]
  %v1576 = vld [vmem:[%s3 + $0x60] sm:$0xff]
  %v1577 = vld [vmem:[%s3 + $0x68] sm:$0xff]
  %v1578 = vld [vmem:[%s3 + $0x70] sm:$0xff]
  %v1579 = vld [vmem:[%s3 + $0x78] sm:$0xff]
  %v1580 = vld [vmem:[%s3 + $0x80] sm:$0xff]
  %v1581 = vld [vmem:[%s3 + $0x88] sm:$0xff]
  %v1582 = vld [vmem:[%s3 + $0x90] sm:$0xff]
  %v1583 = vld [vmem:[%s3 + $0x98] sm:$0xff]
  %v1584 = vld [vmem:[%s3 + $0xa0] sm:$0xff]
  %v1585 = vld [vmem:[%s3 + $0xa8] sm:$0xff]
  %v1586 = vld [vmem:[%s3 + $0xb0] sm:$0xff]
  %v1587 = vld [vmem:[%s3 + $0xb8] sm:$0xff]
  %v1588 = vld [vmem:[%s3 + $0xc0] sm:$0xff]
  %v1589 = vld [vmem:[%s3 + $0xc8] sm:$0xff]
  %v1590 = vld [vmem:[%s3 + $0xd0] sm:$0xff]
  %v1591 = vld [vmem:[%s3 + $0xd8] sm:$0xff]
  %v1592 = vld [vmem:[%s3 + $0xe0] sm:$0xff]
  %v1593 = vld [vmem:[%s3 + $0xe8] sm:$0xff]
  %v1594 = vld [vmem:[%s3 + $0xf0] sm:$0xff]
  %v1595 = vld [vmem:[%s3 + $0xf8] sm:$0xff]
  %v1596 = vld [vmem:[%s3 + $0x100] sm:$0xff]
  %v1597 = vld [vmem:[%s3 + $0x108] sm:$0xff]
  %v1598 = vld [vmem:[%s3 + $0x110] sm:$0xff]
  %v1599 = vld [vmem:[%s3 + $0x118] sm:$0xff]
  %v1600 = vld [vmem:[%s3 + $0x120] sm:$0xff]
  %v1601 = vld [vmem:[%s3 + $0x128] sm:$0xff]
  %v1602 = vld [vmem:[%s3 + $0x130] sm:$0xff]
  %v1603 = vld [vmem:[%s3 + $0x138] sm:$0xff]
  %v1604 = vld [vmem:[%s3 + $0x140] sm:$0xff]
  %v1605 = vld [vmem:[%s3 + $0x148] sm:$0xff]
  %v1606 = vld [vmem:[%s3 + $0x150] sm:$0xff]
  %v1607 = vld [vmem:[%s3 + $0x158] sm:$0xff]
  %v1608 = vld [vmem:[%s3 + $0x160] sm:$0xff]
  %v1609 = vld [vmem:[%s3 + $0x168] sm:$0xff]
  %v1610 = vld [vmem:[%s3 + $0x170] sm:$0xff]
  %v1611 = vld [vmem:[%s3 + $0x178] sm:$0xff]
  %v1612 = vld [vmem:[%s3 + $0x180] sm:$0xff]
  %v1613 = vld [vmem:[%s3 + $0x188] sm:$0xff]
  %v1614 = vld [vmem:[%s3 + $0x190] sm:$0xff]
  %v1615 = vld [vmem:[%s3 + $0x198] sm:$0xff]
  %v1616 = vld [vmem:[%s3 + $0x1a0] sm:$0xff]
  %v1617 = vld [vmem:[%s3 + $0x1a8] sm:$0xff]
  %v1618 = vld [vmem:[%s3 + $0x1b0] sm:$0xff]
  %v1619 = vld [vmem:[%s3 + $0x1b8] sm:$0xff]
  %v1620 = vld [vmem:[%s3 + $0x1c0] sm:$0xff]
  %v1621 = vld [vmem:[%s3 + $0x1c8] sm:$0xff]
  %v1622 = vld [vmem:[%s3 + $0x1d0] sm:$0xff]
  %v1623 = vld [vmem:[%s3 + $0x1d8] sm:$0xff]
  %v1624 = vld [vmem:[%s3 + $0x1e0] sm:$0xff]
  %v1625 = vld [vmem:[%s3 + $0x1e8] sm:$0xff]
  %v1626 = vld [vmem:[%s3 + $0x1f0] sm:$0xff]
  %v1627 = vld [vmem:[%s3 + $0x1f8] sm:$0xff]
  %v1692 = vunpack.c.l.b16 %v1564
  %v1693 = vunpack.c.h.b16 %v1564
  %v1694 = vunpack.c.l.b16 %v1565
  %v1695 = vunpack.c.h.b16 %v1565
  %v1696 = vunpack.c.l.b16 %v1566
  %v1697 = vunpack.c.h.b16 %v1566
  %v1698 = vunpack.c.l.b16 %v1567
  %v1699 = vunpack.c.h.b16 %v1567
  %v1700 = vunpack.c.l.b16 %v1568
  %v1701 = vunpack.c.h.b16 %v1568
  %v1702 = vunpack.c.l.b16 %v1569
  %v1703 = vunpack.c.h.b16 %v1569
  %v1704 = vunpack.c.l.b16 %v1570
  %v1705 = vunpack.c.h.b16 %v1570
  %v1706 = vunpack.c.l.b16 %v1571
  %v1707 = vunpack.c.h.b16 %v1571
  %v1708 = vunpack.c.l.b16 %v1572
  %v1709 = vunpack.c.h.b16 %v1572
  %v1710 = vunpack.c.l.b16 %v1573
  %v1711 = vunpack.c.h.b16 %v1573
  %v1712 = vunpack.c.l.b16 %v1574
  %v1713 = vunpack.c.h.b16 %v1574
  %v1714 = vunpack.c.l.b16 %v1575
  %v1715 = vunpack.c.h.b16 %v1575
  %v1716 = vunpack.c.l.b16 %v1576
  %v1717 = vunpack.c.h.b16 %v1576
  %v1718 = vunpack.c.l.b16 %v1577
  %v1719 = vunpack.c.h.b16 %v1577
  %v1720 = vunpack.c.l.b16 %v1578
  %v1721 = vunpack.c.h.b16 %v1578
  %v1722 = vunpack.c.l.b16 %v1579
  %v1723 = vunpack.c.h.b16 %v1579
  %v1724 = vunpack.c.l.b16 %v1580
  %v1725 = vunpack.c.h.b16 %v1580
  %v1726 = vunpack.c.l.b16 %v1581
  %v1727 = vunpack.c.h.b16 %v1581
  %v1728 = vunpack.c.l.b16 %v1582
  %v1729 = vunpack.c.h.b16 %v1582
  %v1730 = vunpack.c.l.b16 %v1583
  %v1731 = vunpack.c.h.b16 %v1583
  %v1732 = vunpack.c.l.b16 %v1584
  %v1733 = vunpack.c.h.b16 %v1584
  %v1734 = vunpack.c.l.b16 %v1585
  %v1735 = vunpack.c.h.b16 %v1585
  %v1736 = vunpack.c.l.b16 %v1586
  %v1737 = vunpack.c.h.b16 %v1586
  %v1738 = vunpack.c.l.b16 %v1587
  %v1739 = vunpack.c.h.b16 %v1587
  %v1740 = vunpack.c.l.b16 %v1588
  %v1741 = vunpack.c.h.b16 %v1588
  %v1742 = vunpack.c.l.b16 %v1589
  %v1743 = vunpack.c.h.b16 %v1589
  %v1744 = vunpack.c.l.b16 %v1590
  %v1745 = vunpack.c.h.b16 %v1590
  %v1746 = vunpack.c.l.b16 %v1591
  %v1747 = vunpack.c.h.b16 %v1591
  %v1748 = vunpack.c.l.b16 %v1592
  %v1749 = vunpack.c.h.b16 %v1592
  %v1750 = vunpack.c.l.b16 %v1593
  %v1751 = vunpack.c.h.b16 %v1593
  %v1752 = vunpack.c.l.b16 %v1594
  %v1753 = vunpack.c.h.b16 %v1594
  %v1754 = vunpack.c.l.b16 %v1595
  %v1755 = vunpack.c.h.b16 %v1595
  %v1756 = vunpack.c.l.b16 %v1596
  %v1757 = vunpack.c.h.b16 %v1596
  %v1758 = vunpack.c.l.b16 %v1597
  %v1759 = vunpack.c.h.b16 %v1597
  %v1760 = vunpack.c.l.b16 %v1598
  %v1761 = vunpack.c.h.b16 %v1598
  %v1762 = vunpack.c.l.b16 %v1599
  %v1763 = vunpack.c.h.b16 %v1599
  %v1764 = vunpack.c.l.b16 %v1600
  %v1765 = vunpack.c.h.b16 %v1600
  %v1766 = vunpack.c.l.b16 %v1601
  %v1767 = vunpack.c.h.b16 %v1601
  %v1768 = vunpack.c.l.b16 %v1602
  %v1769 = vunpack.c.h.b16 %v1602
  %v1770 = vunpack.c.l.b16 %v1603
  %v1771 = vunpack.c.h.b16 %v1603
  %v1772 = vunpack.c.l.b16 %v1604
  %v1773 = vunpack.c.h.b16 %v1604
  %v1774 = vunpack.c.l.b16 %v1605
  %v1775 = vunpack.c.h.b16 %v1605
  %v1776 = vunpack.c.l.b16 %v1606
  %v1777 = vunpack.c.h.b16 %v1606
  %v1778 = vunpack.c.l.b16 %v1607
  %v1779 = vunpack.c.h.b16 %v1607
  %v1780 = vunpack.c.l.b16 %v1608
  %v1781 = vunpack.c.h.b16 %v1608
  %v1782 = vunpack.c.l.b16 %v1609
  %v1783 = vunpack.c.h.b16 %v1609
  %v1784 = vunpack.c.l.b16 %v1610
  %v1785 = vunpack.c.h.b16 %v1610
  %v1786 = vunpack.c.l.b16 %v1611
  %v1787 = vunpack.c.h.b16 %v1611
  %v1788 = vunpack.c.l.b16 %v1612
  %v1789 = vunpack.c.h.b16 %v1612
  %v1790 = vunpack.c.l.b16 %v1613
  %v1791 = vunpack.c.h.b16 %v1613
  %v1792 = vunpack.c.l.b16 %v1614
  %v1793 = vunpack.c.h.b16 %v1614
  %v1794 = vunpack.c.l.b16 %v1615
  %v1795 = vunpack.c.h.b16 %v1615
  %v1796 = vunpack.c.l.b16 %v1616
  %v1797 = vunpack.c.h.b16 %v1616
  %v1798 = vunpack.c.l.b16 %v1617
  %v1799 = vunpack.c.h.b16 %v1617
  %v1800 = vunpack.c.l.b16 %v1618
  %v1801 = vunpack.c.h.b16 %v1618
  %v1802 = vunpack.c.l.b16 %v1619
  %v1803 = vunpack.c.h.b16 %v1619
  %v1804 = vunpack.c.l.b16 %v1620
  %v1805 = vunpack.c.h.b16 %v1620
  %v1806 = vunpack.c.l.b16 %v1621
  %v1807 = vunpack.c.h.b16 %v1621
  %v1808 = vunpack.c.l.b16 %v1622
  %v1809 = vunpack.c.h.b16 %v1622
  %v1810 = vunpack.c.l.b16 %v1623
  %v1811 = vunpack.c.h.b16 %v1623
  %v1812 = vunpack.c.l.b16 %v1624
  %v1813 = vunpack.c.h.b16 %v1624
  %v1814 = vunpack.c.l.b16 %v1625
  %v1815 = vunpack.c.h.b16 %v1625
  %v1816 = vunpack.c.l.b16 %v1626
  %v1817 = vunpack.c.h.b16 %v1626
  %v1818 = vunpack.c.l.b16 %v1627
  %v1819 = vunpack.c.h.b16 %v1627
  %v1820 = vpack.c.b16 %v1694, %v1692
  %v1821 = vpack.c.b16 %v1695, %v1693
  %v1822 = vpack.c.b16 %v1698, %v1696
  %v1823 = vpack.c.b16 %v1699, %v1697
  %v1824 = vpack.c.b16 %v1702, %v1700
  %v1825 = vpack.c.b16 %v1703, %v1701
  %v1826 = vpack.c.b16 %v1706, %v1704
  %v1827 = vpack.c.b16 %v1707, %v1705
  %v1828 = vpack.c.b16 %v1710, %v1708
  %v1829 = vpack.c.b16 %v1711, %v1709
  %v1830 = vpack.c.b16 %v1714, %v1712
  %v1831 = vpack.c.b16 %v1715, %v1713
  %v1832 = vpack.c.b16 %v1718, %v1716
  %v1833 = vpack.c.b16 %v1719, %v1717
  %v1834 = vpack.c.b16 %v1722, %v1720
  %v1835 = vpack.c.b16 %v1723, %v1721
  %v1836 = vpack.c.b16 %v1726, %v1724
  %v1837 = vpack.c.b16 %v1727, %v1725
  %v1838 = vpack.c.b16 %v1730, %v1728
  %v1839 = vpack.c.b16 %v1731, %v1729
  %v1840 = vpack.c.b16 %v1734, %v1732
  %v1841 = vpack.c.b16 %v1735, %v1733
  %v1842 = vpack.c.b16 %v1738, %v1736
  %v1843 = vpack.c.b16 %v1739, %v1737
  %v1844 = vpack.c.b16 %v1742, %v1740
  %v1845 = vpack.c.b16 %v1743, %v1741
  %v1846 = vpack.c.b16 %v1746, %v1744
  %v1847 = vpack.c.b16 %v1747, %v1745
  %v1848 = vpack.c.b16 %v1750, %v1748
  %v1849 = vpack.c.b16 %v1751, %v1749
  %v1850 = vpack.c.b16 %v1754, %v1752
  %v1851 = vpack.c.b16 %v1755, %v1753
  %v1852 = vpack.c.b16 %v1758, %v1756
  %v1853 = vpack.c.b16 %v1759, %v1757
  %v1854 = vpack.c.b16 %v1762, %v1760
  %v1855 = vpack.c.b16 %v1763, %v1761
  %v1856 = vpack.c.b16 %v1766, %v1764
  %v1857 = vpack.c.b16 %v1767, %v1765
  %v1858 = vpack.c.b16 %v1770, %v1768
  %v1859 = vpack.c.b16 %v1771, %v1769
  %v1860 = vpack.c.b16 %v1774, %v1772
  %v1861 = vpack.c.b16 %v1775, %v1773
  %v1862 = vpack.c.b16 %v1778, %v1776
  %v1863 = vpack.c.b16 %v1779, %v1777
  %v1864 = vpack.c.b16 %v1782, %v1780
  %v1865 = vpack.c.b16 %v1783, %v1781
  %v1866 = vpack.c.b16 %v1786, %v1784
  %v1867 = vpack.c.b16 %v1787, %v1785
  %v1868 = vpack.c.b16 %v1790, %v1788
  %v1869 = vpack.c.b16 %v1791, %v1789
  %v1870 = vpack.c.b16 %v1794, %v1792
  %v1871 = vpack.c.b16 %v1795, %v1793
  %v1872 = vpack.c.b16 %v1798, %v1796
  %v1873 = vpack.c.b16 %v1799, %v1797
  %v1874 = vpack.c.b16 %v1802, %v1800
  %v1875 = vpack.c.b16 %v1803, %v1801
  %v1876 = vpack.c.b16 %v1806, %v1804
  %v1877 = vpack.c.b16 %v1807, %v1805
  %v1878 = vpack.c.b16 %v1810, %v1808
  %v1879 = vpack.c.b16 %v1811, %v1809
  %v1880 = vpack.c.b16 %v1814, %v1812
  %v1881 = vpack.c.b16 %v1815, %v1813
  %v1882 = vpack.c.b16 %v1818, %v1816
  %v1883 = vpack.c.b16 %v1819, %v1817
  %1948 = vmatprep.subr.bf16.mxu0 %v1835
  %1949 = vmatpush1.bf16.msra.mxu0 %v1834
  %1950 = vmatprep.subr.bf16.mxu0 %v1833
  %1951 = vmatpush1.bf16.msra.mxu0 %v1832
  %1952 = vmatprep.subr.bf16.mxu0 %v1831
  %1953 = vmatpush1.bf16.msra.mxu0 %v1830
  %1954 = vmatprep.subr.bf16.mxu0 %v1829
  %1955 = vmatpush1.bf16.msra.mxu0 %v1828
  %1956 = vmatprep.subr.bf16.mxu0 %v1827
  %1957 = vmatpush1.bf16.msra.mxu0 %v1826
  %1958 = vmatprep.subr.bf16.mxu0 %v1825
  %1959 = vmatpush1.bf16.msra.mxu0 %v1824
  %1960 = vmatprep.subr.bf16.mxu0 %v1823
  %1961 = vmatpush1.bf16.msra.mxu0 %v1822
  %1962 = vmatprep.subr.bf16.mxu0 %v1821
  %1963 = vmatpush1.bf16.msra.mxu0 %v1820
  %1964 = vmatprep.subr.bf16.mxu0 %v1851
  %1965 = vmatpush2.bf16.msra.mxu0 %v1850
  %1966 = vmatprep.subr.bf16.mxu0 %v1849
  %1967 = vmatpush2.bf16.msra.mxu0 %v1848
  %1968 = vmatprep.subr.bf16.mxu0 %v1847
  %1969 = vmatpush2.bf16.msra.mxu0 %v1846
  %1970 = vmatprep.subr.bf16.mxu0 %v1845
  %1971 = vmatpush2.bf16.msra.mxu0 %v1844
  %1972 = vmatprep.subr.bf16.mxu0 %v1843
  %1973 = vmatpush2.bf16.msra.mxu0 %v1842
  %1974 = vmatprep.subr.bf16.mxu0 %v1841
  %1975 = vmatpush2.bf16.msra.mxu0 %v1840
  %1976 = vmatprep.subr.bf16.mxu0 %v1839
  %1977 = vmatpush2.bf16.msra.mxu0 %v1838
  %1978 = vmatprep.subr.bf16.mxu0 %v1837
  %1979 = vmatpush2.bf16.msra.mxu0 %v1836
  %1980 = vmatprep.mubr.bf16.mxu0 %v1549
  %1981 = vmatmul.mubr.bf16.gmra.mxu0 %v1548
  %v1982 = vpop.f32.mrf.mxu0
  %v1983 = vadd.f32 0.0, %v1982
  %v1984 = vpop.f32.mrf.mxu0
  %v1985 = vadd.f32 0.0, %v1984
  %v1986 = vpop.f32.mrf.mxu0
  %v1987 = vadd.f32 0.0, %v1986
  %v1988 = vpop.f32.mrf.mxu0
  %v1989 = vadd.f32 0.0, %v1988
  %1990 = vmatprep.mubr.bf16.mxu0 %v1553
  %1991 = vmatmul.mubr.bf16.gmra.mxu0 %v1552
  %v1992 = vpop.f32.mrf.mxu0
  %v1993 = vadd.f32 0.0, %v1992
  %v1994 = vpop.f32.mrf.mxu0
  %v1995 = vadd.f32 0.0, %v1994
  %v1996 = vpop.f32.mrf.mxu0
  %v1997 = vadd.f32 0.0, %v1996
  %v1998 = vpop.f32.mrf.mxu0
  %v1999 = vadd.f32 0.0, %v1998
  %2000 = vmatprep.mubr.bf16.mxu0 %v1557
  %2001 = vmatmul.mubr.bf16.gmra.mxu0 %v1556
  %v2002 = vpop.f32.mrf.mxu0
  %v2003 = vadd.f32 0.0, %v2002
  %v2004 = vpop.f32.mrf.mxu0
  %v2005 = vadd.f32 0.0, %v2004
  %v2006 = vpop.f32.mrf.mxu0
  %v2007 = vadd.f32 0.0, %v2006
  %v2008 = vpop.f32.mrf.mxu0
  %v2009 = vadd.f32 0.0, %v2008
  %2010 = vmatprep.mubr.bf16.mxu0 %v1561
  %2011 = vmatmul.mubr.bf16.gmra.mxu0 %v1560
  %v2012 = vpop.f32.mrf.mxu0
  %v2013 = vadd.f32 0.0, %v2012
  %v2014 = vpop.f32.mrf.mxu0
  %v2015 = vadd.f32 0.0, %v2014
  %v2016 = vpop.f32.mrf.mxu0
  %v2017 = vpop.f32.mrf.mxu0
  %2018 = vdwg.mxu0
  %2019 = vmatprep.subr.bf16.mxu0 %v1867
  %2020 = vmatpush1.bf16.msra.mxu0 %v1866
  %2021 = vmatprep.subr.bf16.mxu0 %v1865
  %2022 = vmatpush1.bf16.msra.mxu0 %v1864
  %2023 = vmatprep.subr.bf16.mxu0 %v1863
  %2024 = vmatpush1.bf16.msra.mxu0 %v1862
  %2025 = vmatprep.subr.bf16.mxu0 %v1861
  %2026 = vmatpush1.bf16.msra.mxu0 %v1860
  %2027 = vmatprep.subr.bf16.mxu0 %v1859
  %2028 = vmatpush1.bf16.msra.mxu0 %v1858
  %2029 = vmatprep.subr.bf16.mxu0 %v1857
  %2030 = vmatpush1.bf16.msra.mxu0 %v1856
  %2031 = vmatprep.subr.bf16.mxu0 %v1855
  %2032 = vmatpush1.bf16.msra.mxu0 %v1854
  %2033 = vmatprep.subr.bf16.mxu0 %v1853
  %2034 = vmatpush1.bf16.msra.mxu0 %v1852
  %2035 = vmatprep.subr.bf16.mxu0 %v1883
  %2036 = vmatpush2.bf16.msra.mxu0 %v1882
  %2037 = vmatprep.subr.bf16.mxu0 %v1881
  %2038 = vmatpush2.bf16.msra.mxu0 %v1880
  %2039 = vmatprep.subr.bf16.mxu0 %v1879
  %2040 = vmatpush2.bf16.msra.mxu0 %v1878
  %2041 = vmatprep.subr.bf16.mxu0 %v1877
  %2042 = vmatpush2.bf16.msra.mxu0 %v1876
  %2043 = vmatprep.subr.bf16.mxu0 %v1875
  %2044 = vmatpush2.bf16.msra.mxu0 %v1874
  %2045 = vmatprep.subr.bf16.mxu0 %v1873
  %2046 = vmatpush2.bf16.msra.mxu0 %v1872
  %2047 = vmatprep.subr.bf16.mxu0 %v1871
  %2048 = vmatpush2.bf16.msra.mxu0 %v1870
  %2049 = vmatprep.subr.bf16.mxu0 %v1869
  %2050 = vmatpush2.bf16.msra.mxu0 %v1868
  %2051 = vmatprep.mubr.bf16.mxu0 %v1551
  %2052 = vmatmul.mubr.bf16.gmra.mxu0 %v1550
  %v2053 = vpop.f32.mrf.mxu0
  %v2054 = vadd.f32 %v1983, %v2053
  %v2055 = vpop.f32.mrf.mxu0
  %v2056 = vadd.f32 %v1985, %v2055
  %v2057 = vpop.f32.mrf.mxu0
  %v2058 = vadd.f32 %v1987, %v2057
  %v2059 = vpop.f32.mrf.mxu0
  %v2060 = vadd.f32 %v1989, %v2059
  %2061 = vmatprep.mubr.bf16.mxu0 %v1555
  %2062 = vmatmul.mubr.bf16.gmra.mxu0 %v1554
  %v2063 = vpop.f32.mrf.mxu0
  %v2064 = vadd.f32 %v1993, %v2063
  %v2065 = vpop.f32.mrf.mxu0
  %v2066 = vadd.f32 %v1995, %v2065
  %v2067 = vpop.f32.mrf.mxu0
  %v2068 = vadd.f32 %v1997, %v2067
  %v2069 = vpop.f32.mrf.mxu0
  %v2070 = vadd.f32 %v1999, %v2069
  %2071 = vmatprep.mubr.bf16.mxu0 %v1559
  %2072 = vmatmul.mubr.bf16.gmra.mxu0 %v1558
  %v2073 = vpop.f32.mrf.mxu0
  %v2074 = vadd.f32 %v2003, %v2073
  %v2075 = vpop.f32.mrf.mxu0
  %v2076 = vadd.f32 %v2005, %v2075
  %v2077 = vpop.f32.mrf.mxu0
  %v2078 = vadd.f32 %v2007, %v2077
  %v2079 = vpop.f32.mrf.mxu0
  %v2080 = vadd.f32 %v2009, %v2079
  %2081 = vmatprep.mubr.bf16.mxu0 %v1563
  %2082 = vmatmul.mubr.bf16.gmra.mxu0 %v1562
  %v2083 = vpop.f32.mrf.mxu0
  %v2084 = vadd.f32 %v2013, %v2083
  %v2085 = vpop.f32.mrf.mxu0
  %v2086 = vadd.f32 %v2015, %v2085
  %v2087 = vpop.f32.mrf.mxu0
  %v2088 = vpop.f32.mrf.mxu0
  %2089 = vdwg.mxu0
  %2097 = vrot.lane.b32.xlu0 %v2054, 64
  %v2098 = vpop.permute.xlu0 %2097
  %2099 = vrot.lane.b32.xlu0 %v2058, 64
  %v2100 = vpop.permute.xlu0 %2099
  %2101 = vrot.lane.b32.xlu0 %v2064, 64
  %v2102 = vpop.permute.xlu0 %2101
  %2103 = vrot.lane.b32.xlu0 %v2068, 64
  %v2104 = vpop.permute.xlu0 %2103
  %2105 = vrot.lane.b32.xlu0 %v2074, 64
  %v2106 = vpop.permute.xlu0 %2105
  %2107 = vrot.lane.b32.xlu0 %v2078, 64
  %v2108 = vpop.permute.xlu0 %2107
  %2109 = vrot.lane.b32.xlu0 %v2084, 64
  %v2110 = vpop.permute.xlu0 %2109
  %v2118 = vmax.f32 %v2054, %v2098
  %v2119 = vmax.f32 %v2058, %v2100
  %v2120 = vmax.f32 %v2064, %v2102
  %v2121 = vmax.f32 %v2068, %v2104
  %v2122 = vmax.f32 %v2074, %v2106
  %v2123 = vmax.f32 %v2078, %v2108
  %v2124 = vmax.f32 %v2084, %v2110
  %v2125 = vmax.f32 %v2118, %v2056
  %v2126 = vmax.f32 %v2119, %v2060
  %v2127 = vmax.f32 %v2120, %v2066
  %v2128 = vmax.f32 %v2121, %v2070
  %v2129 = vmax.f32 %v2122, %v2076
  %v2130 = vmax.f32 %v2123, %v2080
  %v2131 = vmax.f32 %v2124, %v2086
  %2139 = vrot.lane.b32.xlu0 %v2056, 64
  %v2140 = vpop.permute.xlu0 %2139
  %2141 = vrot.lane.b32.xlu0 %v2060, 64
  %v2142 = vpop.permute.xlu0 %2141
  %2143 = vrot.lane.b32.xlu0 %v2066, 64
  %v2144 = vpop.permute.xlu0 %2143
  %2145 = vrot.lane.b32.xlu0 %v2070, 64
  %v2146 = vpop.permute.xlu0 %2145
  %2147 = vrot.lane.b32.xlu0 %v2076, 64
  %v2148 = vpop.permute.xlu0 %2147
  %2149 = vrot.lane.b32.xlu0 %v2080, 64
  %v2150 = vpop.permute.xlu0 %2149
  %2151 = vrot.lane.b32.xlu0 %v2086, 64
  %v2152 = vpop.permute.xlu0 %2151
  %v2160 = vmax.f32 %v2125, %v2140
  %v2161 = vmax.f32 %v2126, %v2142
  %v2162 = vmax.f32 %v2127, %v2144
  %v2163 = vmax.f32 %v2128, %v2146
  %v2164 = vmax.f32 %v2129, %v2148
  %v2165 = vmax.f32 %v2130, %v2150
  %v2166 = vmax.f32 %v2131, %v2152
  %v2167 = vld [vmem:[%s4] sm:$0x1]
  %v2169 = vlaneseq
  %v2170 = vshrl.u32 %v2169, 7
  %v2171 = vsub.s32 0, %v2170
  %v2172 = vrot.slane %v2167, %v2171
  %v2174 = vadd.f32 %v2160, %v2172
  %v2175 = vadd.f32 %v2161, %v2172
  %v2176 = vadd.f32 %v2162, %v2172
  %v2177 = vadd.f32 %v2163, %v2172
  %v2178 = vadd.f32 %v2164, %v2172
  %v2179 = vadd.f32 %v2165, %v2172
  %v2180 = vadd.f32 %v2166, %v2172
  %v2181 = vmax.f32 %v2174, 0.0
  %v2182 = vmax.f32 %v2175, 0.0
  %v2183 = vmax.f32 %v2176, 0.0
  %v2184 = vmax.f32 %v2177, 0.0
  %v2185 = vmax.f32 %v2178, 0.0
  %v2186 = vmax.f32 %v2179, 0.0
  %v2187 = vmax.f32 %v2180, 0.0
  %v2188 = vpack.c.bf16 %v2182, %v2181
  %v2189 = vpack.c.bf16 %v2184, %v2183
  %v2190 = vpack.c.bf16 %v2186, %v2185
  %v2191 = vpack.c.bf16 %v2187, %v2187
  %v2196 = vunpack.c.l.b16 %v2188
  %v2197 = vunpack.c.h.b16 %v2188
  %v2198 = vunpack.c.l.b16 %v2189
  %v2199 = vunpack.c.h.b16 %v2189
  %v2200 = vunpack.c.l.b16 %v2190
  %v2201 = vunpack.c.h.b16 %v2190
  %v2202 = vunpack.c.l.b16 %v2191
  %v2203 = vpack.c.b16 %v2196, %v2196
  %v2204 = vpack.c.b16 %v2197, %v2197
  %v2205 = vpack.c.b16 %v2198, %v2198
  %v2206 = vpack.c.b16 %v2199, %v2199
  %v2207 = vpack.c.b16 %v2200, %v2200
  %v2208 = vpack.c.b16 %v2201, %v2201
  %v2209 = vpack.c.b16 %v2202, %v2202
  %vm2217 = vcmask 519168
  %2218 = vst.msk [vmem:[%s5] sm:$0xf] %vm2217, %v2203
  %2219 = vst.msk [vmem:[%s5 + $0x4] sm:$0xf] %vm2217, %v2204
  %2220 = vst.msk [vmem:[%s5 + $0x8] sm:$0xf] %vm2217, %v2205
  %2221 = vst.msk [vmem:[%s5 + $0xc] sm:$0xf] %vm2217, %v2206
  %2222 = vst.msk [vmem:[%s5 + $0x10] sm:$0xf] %vm2217, %v2207
  %2223 = vst.msk [vmem:[%s5 + $0x14] sm:$0xf] %vm2217, %v2208
  %2224 = vst.msk [vmem:[%s5 + $0x18] sm:$0xf] %vm2217, %v2209
  // Predicated region
  $region22: #{net2_forward.2} parent=0 // pred_check
    _
  $region23: #{net2_forward.2} parent=0 // pred_check_branch
    %2226 = sbr.rel (0) target = $region25
  $region24: #{net2_forward.2} parent=0 // pred_region
    _
  $region25: #{net2_forward.2} parent=0 // pred_fallthru
    _
  // Predicated region
  $region26: #{net2_forward.2} parent=0 // pred_check
    _
  $region27: #{net2_forward.2} parent=0 // pred_check_branch
    %2228 = sbr.rel (0) target = $region29
  $region28: #{net2_forward.2} parent=0 // pred_region
    _
  $region29: #{net2_forward.2} parent=0 // pred_fallthru
    _

</llo_original>
